<compile_context>
chip_gen: v7x
topology: tpu7x:2x2x1
jax: 0.10.0
libtpu: 0.0.40
codegen_flags: <defaults>
</compile_context>

<pallas_src>
import math

import jax
import jax.numpy as jnp
from jax.experimental import pallas as pl
from jax.experimental.pallas import tpu as pltpu

# ----------------------------- problem sizes (args.*) -----------------------
SEQ = 8       # sequence length
B   = 2       # batch
D   = 16      # args.d      (input feature size)
H   = 32      # args.hidden (LSTM hidden size)
C   = 4       # args.c      (linear output classes)


# ----------------------------- Pallas kernel --------------------------------
def lstm_net_kernel(x_ref,          # (SEQ*B, D)   whole sequence, time-major
                    w1ih_ref,       # (D, 4H)
                    w1hh_ref,       # (H, 4H)
                    b1_ref,         # (1, 4H)
                    w2cat_ref,      # (2H, 4H) = concat([W2_ih, W2_hh], axis=0)
                    b2_ref,         # (1, 4H)
                    wl_ref,         # (H, C)
                    bl_ref,         # (1, C)
                    out_ref):       # (SEQ*B, C)
    f32 = jnp.float32

    # ---- load every weight exactly once, reuse across all unrolled steps ----
    w1hh  = w1hh_ref[...]
    w2cat = w2cat_ref[...]
    wl    = wl_ref[...]

    # ---- hoisted layer-1 input projection: one MXU op for the whole seq -----
    x_flat = x_ref[...].astype(f32)                                    # (SEQ*B, D)
    xproj = (jnp.dot(x_flat, w1ih_ref[...], preferred_element_type=f32)
             + jnp.broadcast_to(b1_ref[...], (SEQ * B, 4 * H)))        # (SEQ*B, 4H)

    # ---- hoisted bias broadcasts (JAX does not CSE broadcast_in_dim) --------
    b2b = jnp.broadcast_to(b2_ref[...], (B, 4 * H))
    blb = jnp.broadcast_to(bl_ref[...], (SEQ * B, C))

    def gates(pre):
        # gate layout (PyTorch order): [i | f | g | o], each width H; 4H = 128
        sg = jax.nn.sigmoid(pre)        # full 128-lane EUP op
        th = jnp.tanh(pre)              # full 128-lane EUP op
        i = sg[:, 0 * H:1 * H]
        f = sg[:, 1 * H:2 * H]
        g = th[:, 2 * H:3 * H]
        o = sg[:, 3 * H:4 * H]
        return i, f, g, o

    # ---- recurrent state lives in registers (SSA values), not scratch -------
    h1 = jnp.zeros((B, H), f32)
    c1 = jnp.zeros((B, H), f32)
    h2 = jnp.zeros((B, H), f32)
    c2 = jnp.zeros((B, H), f32)

    y2_steps = []
    for t in range(SEQ):                 # fully unrolled in-kernel time loop
        # layer 1: only the recurrent matmul stays on the serial chain
        g1 = xproj[t * B:(t + 1) * B, :] + jnp.dot(
            h1, w1hh, preferred_element_type=f32)
        i1, f1, gg1, o1 = gates(g1)
        c1 = f1 * c1 + i1 * gg1
        h1 = o1 * jnp.tanh(c1)
        y1 = jnp.tanh(h1)                # inter-layer tanh

        # layer 2: single fused matmul on concatenated [input | hidden]
        g2 = jnp.dot(jnp.concatenate([y1, h2], axis=-1), w2cat,
                     preferred_element_type=f32) + b2b
        i2, f2, gg2, o2 = gates(g2)
        c2 = f2 * c2 + i2 * gg2
        h2 = o2 * jnp.tanh(c2)
        y2_steps.append(jnp.tanh(h2))    # second tanh

    # ---- batched final Linear + sigmoid; single output store ----------------
    # (x.squeeze() in the PyTorch module is a no-op for SEQ=8, B=2)
    y2_all = jnp.concatenate(y2_steps, axis=0)                          # (SEQ*B, H)
    logits = jnp.dot(y2_all, wl, preferred_element_type=f32) + blb      # (SEQ*B, C)
    out_ref[...] = jax.nn.sigmoid(logits).astype(out_ref.dtype)


# ----------------------------- wrapper ---------------------------------------
def lstm_net_forward(x, params):
    """x: (SEQ, B, D) float32 -> (SEQ, B, C) float32."""
    (w1ih, w1hh, b1, w2ih, w2hh, b2, wl, bl) = params

    # Fuse layer-2 ih/hh weights outside the kernel (XLA-side, one-time).
    w2cat = jnp.concatenate([w2ih, w2hh], axis=0)          # (2H, 4H)
    x_flat = x.reshape(SEQ * B, D)                          # time-major flatten

    full = lambda shape: pl.BlockSpec(shape, lambda i: tuple(0 for _ in shape))

    out = pl.pallas_call(
        lstm_net_kernel,
        out_shape=jax.ShapeDtypeStruct((SEQ * B, C), jnp.float32),
        grid_spec=pltpu.PrefetchScalarGridSpec(
            num_scalar_prefetch=0,
            grid=(1,),                                       # single invocation
            in_specs=[
                full((SEQ * B, D)),                          # whole x in VMEM
                full((D, 4 * H)), full((H, 4 * H)), full((1, 4 * H)),
                full((2 * H, 4 * H)), full((1, 4 * H)),
                full((H, C)), full((1, C)),
            ],
            out_specs=full((SEQ * B, C)),
        ),
        compiler_params=pltpu.CompilerParams(
            dimension_semantics=("arbitrary",)),
    )(x_flat, w1ih, w1hh, b1, w2cat, b2, wl, bl)

    return out.reshape(SEQ, B, C)


# ----------------------------- pure-JAX reference ----------------------------
def lstm_layer_ref(x, w_ih, w_hh, bias):
    def step(carry, x_t):
        h, c = carry
        g = x_t @ w_ih + h @ w_hh + bias[0]
        i = jax.nn.sigmoid(g[:, 0 * H:1 * H])
        f = jax.nn.sigmoid(g[:, 1 * H:2 * H])
        gg = jnp.tanh(g[:, 2 * H:3 * H])
        o = jax.nn.sigmoid(g[:, 3 * H:4 * H])
        c = f * c + i * gg
        h = o * jnp.tanh(c)
        return (h, c), h
    init = (jnp.zeros((B, H), jnp.float32), jnp.zeros((B, H), jnp.float32))
    _, hs = jax.lax.scan(step, init, x)
    return hs


def lstm_net_ref(x, params):
    (w1ih, w1hh, b1, w2ih, w2hh, b2, wl, bl) = params
    y = jnp.tanh(lstm_layer_ref(x, w1ih, w1hh, b1))
    y = jnp.tanh(lstm_layer_ref(y, w2ih, w2hh, b2))
    y = jnp.squeeze(y)   # no-op for these shapes
    return jax.nn.sigmoid(y @ wl + bl[0])


# ----------------------------- parameter init --------------------------------
def init_params(key):
    # PyTorch nn.LSTM / nn.Linear default: U(-1/sqrt(hidden_or_fan_in), +)
    ks = jax.random.split(key, 10)
    s = 1.0 / math.sqrt(H)

    def u(k, shape, scale):
        return jax.random.uniform(k, shape, jnp.float32, -scale, scale)

    # LSTM weights stored pre-transposed: (in, 4H) so the kernel does x @ W.
    w1ih = u(ks[0], (D, 4 * H), s)
    w1hh = u(ks[1], (H, 4 * H), s)
    b1   = u(ks[2], (1, 4 * H), s) + u(ks[3], (1, 4 * H), s)   # b_ih + b_hh
    w2ih = u(ks[4], (H, 4 * H), s)
    w2hh = u(ks[5], (H, 4 * H), s)
    b2   = u(ks[6], (1, 4 * H), s) + u(ks[7], (1, 4 * H), s)
    wl   = u(ks[8], (H, C), s)                                  # Linear: (H, C)
    bl   = u(ks[9], (1, C), s)
    return (w1ih, w1hh, b1, w2ih, w2hh, b2, wl, bl)


if __name__ == "__main__":
    key = jax.random.PRNGKey(0)
    k_x, k_p = jax.random.split(key)
    x = jax.random.normal(k_x, (SEQ, B, D), jnp.float32)
    params = init_params(k_p)

    out = lstm_net_forward(x, params)
    out = jax.block_until_ready(out)

    ref = jax.block_until_ready(lstm_net_ref(x, params))
    assert out.shape == (SEQ, B, C), out.shape
    assert jnp.allclose(out, ref, atol=1e-5, rtol=1e-5), \
        float(jnp.max(jnp.abs(out - ref)))

    print("KERNEL_OK")
</pallas_src>

<mosaic_0001>
module attributes {stable_mosaic.version = 11 : i64} {
  func.func @lstm_net_kernel(%arg0: i32, %arg1: memref<16x16xf32, #tpu.memory_space<vmem>>, %arg2: memref<16x128xf32, #tpu.memory_space<vmem>>, %arg3: memref<32x128xf32, #tpu.memory_space<vmem>>, %arg4: memref<1x128xf32, #tpu.memory_space<vmem>>, %arg5: memref<64x128xf32, #tpu.memory_space<vmem>>, %arg6: memref<1x128xf32, #tpu.memory_space<vmem>>, %arg7: memref<32x4xf32, #tpu.memory_space<vmem>>, %arg8: memref<1x4xf32, #tpu.memory_space<vmem>>, %arg9: memref<16x4xf32, #tpu.memory_space<vmem>>) attributes {dimension_semantics = [#tpu.dimension_semantics<arbitrary>], iteration_bounds = array<i64: 1>, scalar_prefetch = 0 : i64, scratch_operands = 0 : i64, tpu.core_type = #tpu.core_type<tc>, window_params = [{pipeline_mode = #tpu.pipeline_mode<synchronous>, transform_indices = @transform_0, window_bounds = array<i64: 16, 16>}, {pipeline_mode = #tpu.pipeline_mode<synchronous>, transform_indices = @transform_1, window_bounds = array<i64: 16, 128>}, {pipeline_mode = #tpu.pipeline_mode<synchronous>, transform_indices = @transform_2, window_bounds = array<i64: 32, 128>}, {pipeline_mode = #tpu.pipeline_mode<synchronous>, transform_indices = @transform_3, window_bounds = array<i64: 1, 128>}, {pipeline_mode = #tpu.pipeline_mode<synchronous>, transform_indices = @transform_4, window_bounds = array<i64: 64, 128>}, {pipeline_mode = #tpu.pipeline_mode<synchronous>, transform_indices = @transform_5, window_bounds = array<i64: 1, 128>}, {pipeline_mode = #tpu.pipeline_mode<synchronous>, transform_indices = @transform_6, window_bounds = array<i64: 32, 4>}, {pipeline_mode = #tpu.pipeline_mode<synchronous>, transform_indices = @transform_7, window_bounds = array<i64: 1, 4>}, {pipeline_mode = #tpu.pipeline_mode<synchronous>, transform_indices = @transform_8, window_bounds = array<i64: 16, 4>}]} {
    %c0 = arith.constant 0 : index
    %c0_0 = arith.constant 0 : index
    %0 = vector.load %arg3[%c0, %c0_0] : memref<32x128xf32, #tpu.memory_space<vmem>>, vector<32x128xf32>
    %c0_1 = arith.constant 0 : index
    %c0_2 = arith.constant 0 : index
    %1 = vector.load %arg5[%c0_1, %c0_2] : memref<64x128xf32, #tpu.memory_space<vmem>>, vector<64x128xf32>
    %c0_3 = arith.constant 0 : index
    %c0_4 = arith.constant 0 : index
    %2 = vector.load %arg7[%c0_3, %c0_4] : memref<32x4xf32, #tpu.memory_space<vmem>>, vector<32x4xf32>
    %c0_5 = arith.constant 0 : index
    %c0_6 = arith.constant 0 : index
    %3 = vector.load %arg1[%c0_5, %c0_6] : memref<16x16xf32, #tpu.memory_space<vmem>>, vector<16x16xf32>
    %c0_7 = arith.constant 0 : index
    %c0_8 = arith.constant 0 : index
    %4 = vector.load %arg2[%c0_7, %c0_8] : memref<16x128xf32, #tpu.memory_space<vmem>>, vector<16x128xf32>
    %cst = arith.constant dense<0.000000e+00> : vector<16x128xf32>
    %5 = tpu.matmul %3, %4, %cst {dimension_numbers = #tpu.dot_dimension_numbers<[1], [0], [0], [1], [0, 0, 1, 1], [], []>} : vector<16x16xf32>, vector<16x128xf32>, vector<16x128xf32> -> vector<16x128xf32>
    %c0_9 = arith.constant 0 : index
    %c0_10 = arith.constant 0 : index
    %6 = vector.load %arg4[%c0_9, %c0_10] : memref<1x128xf32, #tpu.memory_space<vmem>>, vector<1x128xf32>
    %7 = vector.shape_cast %6 : vector<1x128xf32> to vector<1x128xf32>
    %8 = vector.broadcast %7 : vector<1x128xf32> to vector<16x128xf32>
    %9 = arith.addf %5, %8 : vector<16x128xf32>
    %c0_11 = arith.constant 0 : index
    %c0_12 = arith.constant 0 : index
    %10 = vector.load %arg6[%c0_11, %c0_12] : memref<1x128xf32, #tpu.memory_space<vmem>>, vector<1x128xf32>
    %11 = vector.shape_cast %10 : vector<1x128xf32> to vector<1x128xf32>
    %12 = vector.broadcast %11 : vector<1x128xf32> to vector<2x128xf32>
    %c0_13 = arith.constant 0 : index
    %c0_14 = arith.constant 0 : index
    %13 = vector.load %arg8[%c0_13, %c0_14] : memref<1x4xf32, #tpu.memory_space<vmem>>, vector<1x4xf32>
    %14 = vector.shape_cast %13 : vector<1x4xf32> to vector<1x4xf32>
    %15 = vector.broadcast %14 : vector<1x4xf32> to vector<16x4xf32>
    %cst_15 = arith.constant 0.000000e+00 : f32
    %16 = vector.broadcast %cst_15 : f32 to vector<2x32xf32>
    %cst_16 = arith.constant 0.000000e+00 : f32
    %17 = vector.broadcast %cst_16 : f32 to vector<2x32xf32>
    %cst_17 = arith.constant 0.000000e+00 : f32
    %18 = vector.broadcast %cst_17 : f32 to vector<2x32xf32>
    %cst_18 = arith.constant 0.000000e+00 : f32
    %19 = vector.broadcast %cst_18 : f32 to vector<2x32xf32>
    %20 = vector.extract_strided_slice %9 {offsets = [0, 0], sizes = [2, 128], strides = [1, 1]} : vector<16x128xf32> to vector<2x128xf32>
    %cst_19 = arith.constant dense<0.000000e+00> : vector<2x128xf32>
    %21 = tpu.matmul %16, %0, %cst_19 {dimension_numbers = #tpu.dot_dimension_numbers<[1], [0], [0], [1], [0, 0, 1, 1], [], []>} : vector<2x32xf32>, vector<32x128xf32>, vector<2x128xf32> -> vector<2x128xf32>
    %22 = arith.addf %20, %21 : vector<2x128xf32>
    %23 = arith.negf %22 : vector<2x128xf32>
    %24 = math.exp %23 : vector<2x128xf32>
    %cst_20 = arith.constant 1.000000e+00 : f32
    %25 = vector.broadcast %cst_20 : f32 to vector<2x128xf32>
    %26 = arith.addf %25, %24 : vector<2x128xf32>
    %27 = arith.divf %25, %26 : vector<2x128xf32>
    %28 = math.tanh %22 : vector<2x128xf32>
    %29 = vector.extract_strided_slice %27 {offsets = [0, 0], sizes = [2, 32], strides = [1, 1]} : vector<2x128xf32> to vector<2x32xf32>
    %30 = vector.extract_strided_slice %27 {offsets = [0, 32], sizes = [2, 32], strides = [1, 1]} : vector<2x128xf32> to vector<2x32xf32>
    %31 = vector.extract_strided_slice %28 {offsets = [0, 64], sizes = [2, 32], strides = [1, 1]} : vector<2x128xf32> to vector<2x32xf32>
    %32 = vector.extract_strided_slice %27 {offsets = [0, 96], sizes = [2, 32], strides = [1, 1]} : vector<2x128xf32> to vector<2x32xf32>
    %33 = arith.mulf %30, %17 : vector<2x32xf32>
    %34 = arith.mulf %29, %31 : vector<2x32xf32>
    %35 = arith.addf %33, %34 : vector<2x32xf32>
    %36 = math.tanh %35 : vector<2x32xf32>
    %37 = arith.mulf %32, %36 : vector<2x32xf32>
    %38 = math.tanh %37 : vector<2x32xf32>
    %39 = tpu.concatenate %38, %18 in 1 : vector<2x32xf32>, vector<2x32xf32> -> vector<2x64xf32>
    %cst_21 = arith.constant dense<0.000000e+00> : vector<2x128xf32>
    %40 = tpu.matmul %39, %1, %cst_21 {dimension_numbers = #tpu.dot_dimension_numbers<[1], [0], [0], [1], [0, 0, 1, 1], [], []>} : vector<2x64xf32>, vector<64x128xf32>, vector<2x128xf32> -> vector<2x128xf32>
    %41 = arith.addf %40, %12 : vector<2x128xf32>
    %42 = arith.negf %41 : vector<2x128xf32>
    %43 = math.exp %42 : vector<2x128xf32>
    %cst_22 = arith.constant 1.000000e+00 : f32
    %44 = vector.broadcast %cst_22 : f32 to vector<2x128xf32>
    %45 = arith.addf %44, %43 : vector<2x128xf32>
    %46 = arith.divf %44, %45 : vector<2x128xf32>
    %47 = math.tanh %41 : vector<2x128xf32>
    %48 = vector.extract_strided_slice %46 {offsets = [0, 0], sizes = [2, 32], strides = [1, 1]} : vector<2x128xf32> to vector<2x32xf32>
    %49 = vector.extract_strided_slice %46 {offsets = [0, 32], sizes = [2, 32], strides = [1, 1]} : vector<2x128xf32> to vector<2x32xf32>
    %50 = vector.extract_strided_slice %47 {offsets = [0, 64], sizes = [2, 32], strides = [1, 1]} : vector<2x128xf32> to vector<2x32xf32>
    %51 = vector.extract_strided_slice %46 {offsets = [0, 96], sizes = [2, 32], strides = [1, 1]} : vector<2x128xf32> to vector<2x32xf32>
    %52 = arith.mulf %49, %19 : vector<2x32xf32>
    %53 = arith.mulf %48, %50 : vector<2x32xf32>
    %54 = arith.addf %52, %53 : vector<2x32xf32>
    %55 = math.tanh %54 : vector<2x32xf32>
    %56 = arith.mulf %51, %55 : vector<2x32xf32>
    %57 = math.tanh %56 : vector<2x32xf32>
    %58 = vector.extract_strided_slice %9 {offsets = [2, 0], sizes = [2, 128], strides = [1, 1]} : vector<16x128xf32> to vector<2x128xf32>
    %cst_23 = arith.constant dense<0.000000e+00> : vector<2x128xf32>
    %59 = tpu.matmul %37, %0, %cst_23 {dimension_numbers = #tpu.dot_dimension_numbers<[1], [0], [0], [1], [0, 0, 1, 1], [], []>} : vector<2x32xf32>, vector<32x128xf32>, vector<2x128xf32> -> vector<2x128xf32>
    %60 = arith.addf %58, %59 : vector<2x128xf32>
    %61 = arith.negf %60 : vector<2x128xf32>
    %62 = math.exp %61 : vector<2x128xf32>
    %cst_24 = arith.constant 1.000000e+00 : f32
    %63 = vector.broadcast %cst_24 : f32 to vector<2x128xf32>
    %64 = arith.addf %63, %62 : vector<2x128xf32>
    %65 = arith.divf %63, %64 : vector<2x128xf32>
    %66 = math.tanh %60 : vector<2x128xf32>
    %67 = vector.extract_strided_slice %65 {offsets = [0, 0], sizes = [2, 32], strides = [1, 1]} : vector<2x128xf32> to vector<2x32xf32>
    %68 = vector.extract_strided_slice %65 {offsets = [0, 32], sizes = [2, 32], strides = [1, 1]} : vector<2x128xf32> to vector<2x32xf32>
    %69 = vector.extract_strided_slice %66 {offsets = [0, 64], sizes = [2, 32], strides = [1, 1]} : vector<2x128xf32> to vector<2x32xf32>
    %70 = vector.extract_strided_slice %65 {offsets = [0, 96], sizes = [2, 32], strides = [1, 1]} : vector<2x128xf32> to vector<2x32xf32>
    %71 = arith.mulf %68, %35 : vector<2x32xf32>
    %72 = arith.mulf %67, %69 : vector<2x32xf32>
    %73 = arith.addf %71, %72 : vector<2x32xf32>
    %74 = math.tanh %73 : vector<2x32xf32>
    %75 = arith.mulf %70, %74 : vector<2x32xf32>
    %76 = math.tanh %75 : vector<2x32xf32>
    %77 = tpu.concatenate %76, %56 in 1 : vector<2x32xf32>, vector<2x32xf32> -> vector<2x64xf32>
    %cst_25 = arith.constant dense<0.000000e+00> : vector<2x128xf32>
    %78 = tpu.matmul %77, %1, %cst_25 {dimension_numbers = #tpu.dot_dimension_numbers<[1], [0], [0], [1], [0, 0, 1, 1], [], []>} : vector<2x64xf32>, vector<64x128xf32>, vector<2x128xf32> -> vector<2x128xf32>
    %79 = arith.addf %78, %12 : vector<2x128xf32>
    %80 = arith.negf %79 : vector<2x128xf32>
    %81 = math.exp %80 : vector<2x128xf32>
    %cst_26 = arith.constant 1.000000e+00 : f32
    %82 = vector.broadcast %cst_26 : f32 to vector<2x128xf32>
    %83 = arith.addf %82, %81 : vector<2x128xf32>
    %84 = arith.divf %82, %83 : vector<2x128xf32>
    %85 = math.tanh %79 : vector<2x128xf32>
    %86 = vector.extract_strided_slice %84 {offsets = [0, 0], sizes = [2, 32], strides = [1, 1]} : vector<2x128xf32> to vector<2x32xf32>
    %87 = vector.extract_strided_slice %84 {offsets = [0, 32], sizes = [2, 32], strides = [1, 1]} : vector<2x128xf32> to vector<2x32xf32>
    %88 = vector.extract_strided_slice %85 {offsets = [0, 64], sizes = [2, 32], strides = [1, 1]} : vector<2x128xf32> to vector<2x32xf32>
    %89 = vector.extract_strided_slice %84 {offsets = [0, 96], sizes = [2, 32], strides = [1, 1]} : vector<2x128xf32> to vector<2x32xf32>
    %90 = arith.mulf %87, %54 : vector<2x32xf32>
    %91 = arith.mulf %86, %88 : vector<2x32xf32>
    %92 = arith.addf %90, %91 : vector<2x32xf32>
    %93 = math.tanh %92 : vector<2x32xf32>
    %94 = arith.mulf %89, %93 : vector<2x32xf32>
    %95 = math.tanh %94 : vector<2x32xf32>
    %96 = vector.extract_strided_slice %9 {offsets = [4, 0], sizes = [2, 128], strides = [1, 1]} : vector<16x128xf32> to vector<2x128xf32>
    %cst_27 = arith.constant dense<0.000000e+00> : vector<2x128xf32>
    %97 = tpu.matmul %75, %0, %cst_27 {dimension_numbers = #tpu.dot_dimension_numbers<[1], [0], [0], [1], [0, 0, 1, 1], [], []>} : vector<2x32xf32>, vector<32x128xf32>, vector<2x128xf32> -> vector<2x128xf32>
    %98 = arith.addf %96, %97 : vector<2x128xf32>
    %99 = arith.negf %98 : vector<2x128xf32>
    %100 = math.exp %99 : vector<2x128xf32>
    %cst_28 = arith.constant 1.000000e+00 : f32
    %101 = vector.broadcast %cst_28 : f32 to vector<2x128xf32>
    %102 = arith.addf %101, %100 : vector<2x128xf32>
    %103 = arith.divf %101, %102 : vector<2x128xf32>
    %104 = math.tanh %98 : vector<2x128xf32>
    %105 = vector.extract_strided_slice %103 {offsets = [0, 0], sizes = [2, 32], strides = [1, 1]} : vector<2x128xf32> to vector<2x32xf32>
    %106 = vector.extract_strided_slice %103 {offsets = [0, 32], sizes = [2, 32], strides = [1, 1]} : vector<2x128xf32> to vector<2x32xf32>
    %107 = vector.extract_strided_slice %104 {offsets = [0, 64], sizes = [2, 32], strides = [1, 1]} : vector<2x128xf32> to vector<2x32xf32>
    %108 = vector.extract_strided_slice %103 {offsets = [0, 96], sizes = [2, 32], strides = [1, 1]} : vector<2x128xf32> to vector<2x32xf32>
    %109 = arith.mulf %106, %73 : vector<2x32xf32>
    %110 = arith.mulf %105, %107 : vector<2x32xf32>
    %111 = arith.addf %109, %110 : vector<2x32xf32>
    %112 = math.tanh %111 : vector<2x32xf32>
    %113 = arith.mulf %108, %112 : vector<2x32xf32>
    %114 = math.tanh %113 : vector<2x32xf32>
    %115 = tpu.concatenate %114, %94 in 1 : vector<2x32xf32>, vector<2x32xf32> -> vector<2x64xf32>
    %cst_29 = arith.constant dense<0.000000e+00> : vector<2x128xf32>
    %116 = tpu.matmul %115, %1, %cst_29 {dimension_numbers = #tpu.dot_dimension_numbers<[1], [0], [0], [1], [0, 0, 1, 1], [], []>} : vector<2x64xf32>, vector<64x128xf32>, vector<2x128xf32> -> vector<2x128xf32>
    %117 = arith.addf %116, %12 : vector<2x128xf32>
    %118 = arith.negf %117 : vector<2x128xf32>
    %119 = math.exp %118 : vector<2x128xf32>
    %cst_30 = arith.constant 1.000000e+00 : f32
    %120 = vector.broadcast %cst_30 : f32 to vector<2x128xf32>
    %121 = arith.addf %120, %119 : vector<2x128xf32>
    %122 = arith.divf %120, %121 : vector<2x128xf32>
    %123 = math.tanh %117 : vector<2x128xf32>
    %124 = vector.extract_strided_slice %122 {offsets = [0, 0], sizes = [2, 32], strides = [1, 1]} : vector<2x128xf32> to vector<2x32xf32>
    %125 = vector.extract_strided_slice %122 {offsets = [0, 32], sizes = [2, 32], strides = [1, 1]} : vector<2x128xf32> to vector<2x32xf32>
    %126 = vector.extract_strided_slice %123 {offsets = [0, 64], sizes = [2, 32], strides = [1, 1]} : vector<2x128xf32> to vector<2x32xf32>
    %127 = vector.extract_strided_slice %122 {offsets = [0, 96], sizes = [2, 32], strides = [1, 1]} : vector<2x128xf32> to vector<2x32xf32>
    %128 = arith.mulf %125, %92 : vector<2x32xf32>
    %129 = arith.mulf %124, %126 : vector<2x32xf32>
    %130 = arith.addf %128, %129 : vector<2x32xf32>
    %131 = math.tanh %130 : vector<2x32xf32>
    %132 = arith.mulf %127, %131 : vector<2x32xf32>
    %133 = math.tanh %132 : vector<2x32xf32>
    %134 = vector.extract_strided_slice %9 {offsets = [6, 0], sizes = [2, 128], strides = [1, 1]} : vector<16x128xf32> to vector<2x128xf32>
    %cst_31 = arith.constant dense<0.000000e+00> : vector<2x128xf32>
    %135 = tpu.matmul %113, %0, %cst_31 {dimension_numbers = #tpu.dot_dimension_numbers<[1], [0], [0], [1], [0, 0, 1, 1], [], []>} : vector<2x32xf32>, vector<32x128xf32>, vector<2x128xf32> -> vector<2x128xf32>
    %136 = arith.addf %134, %135 : vector<2x128xf32>
    %137 = arith.negf %136 : vector<2x128xf32>
    %138 = math.exp %137 : vector<2x128xf32>
    %cst_32 = arith.constant 1.000000e+00 : f32
    %139 = vector.broadcast %cst_32 : f32 to vector<2x128xf32>
    %140 = arith.addf %139, %138 : vector<2x128xf32>
    %141 = arith.divf %139, %140 : vector<2x128xf32>
    %142 = math.tanh %136 : vector<2x128xf32>
    %143 = vector.extract_strided_slice %141 {offsets = [0, 0], sizes = [2, 32], strides = [1, 1]} : vector<2x128xf32> to vector<2x32xf32>
    %144 = vector.extract_strided_slice %141 {offsets = [0, 32], sizes = [2, 32], strides = [1, 1]} : vector<2x128xf32> to vector<2x32xf32>
    %145 = vector.extract_strided_slice %142 {offsets = [0, 64], sizes = [2, 32], strides = [1, 1]} : vector<2x128xf32> to vector<2x32xf32>
    %146 = vector.extract_strided_slice %141 {offsets = [0, 96], sizes = [2, 32], strides = [1, 1]} : vector<2x128xf32> to vector<2x32xf32>
    %147 = arith.mulf %144, %111 : vector<2x32xf32>
    %148 = arith.mulf %143, %145 : vector<2x32xf32>
    %149 = arith.addf %147, %148 : vector<2x32xf32>
    %150 = math.tanh %149 : vector<2x32xf32>
    %151 = arith.mulf %146, %150 : vector<2x32xf32>
    %152 = math.tanh %151 : vector<2x32xf32>
    %153 = tpu.concatenate %152, %132 in 1 : vector<2x32xf32>, vector<2x32xf32> -> vector<2x64xf32>
    %cst_33 = arith.constant dense<0.000000e+00> : vector<2x128xf32>
    %154 = tpu.matmul %153, %1, %cst_33 {dimension_numbers = #tpu.dot_dimension_numbers<[1], [0], [0], [1], [0, 0, 1, 1], [], []>} : vector<2x64xf32>, vector<64x128xf32>, vector<2x128xf32> -> vector<2x128xf32>
    %155 = arith.addf %154, %12 : vector<2x128xf32>
    %156 = arith.negf %155 : vector<2x128xf32>
    %157 = math.exp %156 : vector<2x128xf32>
    %cst_34 = arith.constant 1.000000e+00 : f32
    %158 = vector.broadcast %cst_34 : f32 to vector<2x128xf32>
    %159 = arith.addf %158, %157 : vector<2x128xf32>
    %160 = arith.divf %158, %159 : vector<2x128xf32>
    %161 = math.tanh %155 : vector<2x128xf32>
    %162 = vector.extract_strided_slice %160 {offsets = [0, 0], sizes = [2, 32], strides = [1, 1]} : vector<2x128xf32> to vector<2x32xf32>
    %163 = vector.extract_strided_slice %160 {offsets = [0, 32], sizes = [2, 32], strides = [1, 1]} : vector<2x128xf32> to vector<2x32xf32>
    %164 = vector.extract_strided_slice %161 {offsets = [0, 64], sizes = [2, 32], strides = [1, 1]} : vector<2x128xf32> to vector<2x32xf32>
    %165 = vector.extract_strided_slice %160 {offsets = [0, 96], sizes = [2, 32], strides = [1, 1]} : vector<2x128xf32> to vector<2x32xf32>
    %166 = arith.mulf %163, %130 : vector<2x32xf32>
    %167 = arith.mulf %162, %164 : vector<2x32xf32>
    %168 = arith.addf %166, %167 : vector<2x32xf32>
    %169 = math.tanh %168 : vector<2x32xf32>
    %170 = arith.mulf %165, %169 : vector<2x32xf32>
    %171 = math.tanh %170 : vector<2x32xf32>
    %172 = vector.extract_strided_slice %9 {offsets = [8, 0], sizes = [2, 128], strides = [1, 1]} : vector<16x128xf32> to vector<2x128xf32>
    %cst_35 = arith.constant dense<0.000000e+00> : vector<2x128xf32>
    %173 = tpu.matmul %151, %0, %cst_35 {dimension_numbers = #tpu.dot_dimension_numbers<[1], [0], [0], [1], [0, 0, 1, 1], [], []>} : vector<2x32xf32>, vector<32x128xf32>, vector<2x128xf32> -> vector<2x128xf32>
    %174 = arith.addf %172, %173 : vector<2x128xf32>
    %175 = arith.negf %174 : vector<2x128xf32>
    %176 = math.exp %175 : vector<2x128xf32>
    %cst_36 = arith.constant 1.000000e+00 : f32
    %177 = vector.broadcast %cst_36 : f32 to vector<2x128xf32>
    %178 = arith.addf %177, %176 : vector<2x128xf32>
    %179 = arith.divf %177, %178 : vector<2x128xf32>
    %180 = math.tanh %174 : vector<2x128xf32>
    %181 = vector.extract_strided_slice %179 {offsets = [0, 0], sizes = [2, 32], strides = [1, 1]} : vector<2x128xf32> to vector<2x32xf32>
    %182 = vector.extract_strided_slice %179 {offsets = [0, 32], sizes = [2, 32], strides = [1, 1]} : vector<2x128xf32> to vector<2x32xf32>
    %183 = vector.extract_strided_slice %180 {offsets = [0, 64], sizes = [2, 32], strides = [1, 1]} : vector<2x128xf32> to vector<2x32xf32>
    %184 = vector.extract_strided_slice %179 {offsets = [0, 96], sizes = [2, 32], strides = [1, 1]} : vector<2x128xf32> to vector<2x32xf32>
    %185 = arith.mulf %182, %149 : vector<2x32xf32>
    %186 = arith.mulf %181, %183 : vector<2x32xf32>
    %187 = arith.addf %185, %186 : vector<2x32xf32>
    %188 = math.tanh %187 : vector<2x32xf32>
    %189 = arith.mulf %184, %188 : vector<2x32xf32>
    %190 = math.tanh %189 : vector<2x32xf32>
    %191 = tpu.concatenate %190, %170 in 1 : vector<2x32xf32>, vector<2x32xf32> -> vector<2x64xf32>
    %cst_37 = arith.constant dense<0.000000e+00> : vector<2x128xf32>
    %192 = tpu.matmul %191, %1, %cst_37 {dimension_numbers = #tpu.dot_dimension_numbers<[1], [0], [0], [1], [0, 0, 1, 1], [], []>} : vector<2x64xf32>, vector<64x128xf32>, vector<2x128xf32> -> vector<2x128xf32>
    %193 = arith.addf %192, %12 : vector<2x128xf32>
    %194 = arith.negf %193 : vector<2x128xf32>
    %195 = math.exp %194 : vector<2x128xf32>
    %cst_38 = arith.constant 1.000000e+00 : f32
    %196 = vector.broadcast %cst_38 : f32 to vector<2x128xf32>
    %197 = arith.addf %196, %195 : vector<2x128xf32>
    %198 = arith.divf %196, %197 : vector<2x128xf32>
    %199 = math.tanh %193 : vector<2x128xf32>
    %200 = vector.extract_strided_slice %198 {offsets = [0, 0], sizes = [2, 32], strides = [1, 1]} : vector<2x128xf32> to vector<2x32xf32>
    %201 = vector.extract_strided_slice %198 {offsets = [0, 32], sizes = [2, 32], strides = [1, 1]} : vector<2x128xf32> to vector<2x32xf32>
    %202 = vector.extract_strided_slice %199 {offsets = [0, 64], sizes = [2, 32], strides = [1, 1]} : vector<2x128xf32> to vector<2x32xf32>
    %203 = vector.extract_strided_slice %198 {offsets = [0, 96], sizes = [2, 32], strides = [1, 1]} : vector<2x128xf32> to vector<2x32xf32>
    %204 = arith.mulf %201, %168 : vector<2x32xf32>
    %205 = arith.mulf %200, %202 : vector<2x32xf32>
    %206 = arith.addf %204, %205 : vector<2x32xf32>
    %207 = math.tanh %206 : vector<2x32xf32>
    %208 = arith.mulf %203, %207 : vector<2x32xf32>
    %209 = math.tanh %208 : vector<2x32xf32>
    %210 = vector.extract_strided_slice %9 {offsets = [10, 0], sizes = [2, 128], strides = [1, 1]} : vector<16x128xf32> to vector<2x128xf32>
    %cst_39 = arith.constant dense<0.000000e+00> : vector<2x128xf32>
    %211 = tpu.matmul %189, %0, %cst_39 {dimension_numbers = #tpu.dot_dimension_numbers<[1], [0], [0], [1], [0, 0, 1, 1], [], []>} : vector<2x32xf32>, vector<32x128xf32>, vector<2x128xf32> -> vector<2x128xf32>
    %212 = arith.addf %210, %211 : vector<2x128xf32>
    %213 = arith.negf %212 : vector<2x128xf32>
    %214 = math.exp %213 : vector<2x128xf32>
    %cst_40 = arith.constant 1.000000e+00 : f32
    %215 = vector.broadcast %cst_40 : f32 to vector<2x128xf32>
    %216 = arith.addf %215, %214 : vector<2x128xf32>
    %217 = arith.divf %215, %216 : vector<2x128xf32>
    %218 = math.tanh %212 : vector<2x128xf32>
    %219 = vector.extract_strided_slice %217 {offsets = [0, 0], sizes = [2, 32], strides = [1, 1]} : vector<2x128xf32> to vector<2x32xf32>
    %220 = vector.extract_strided_slice %217 {offsets = [0, 32], sizes = [2, 32], strides = [1, 1]} : vector<2x128xf32> to vector<2x32xf32>
    %221 = vector.extract_strided_slice %218 {offsets = [0, 64], sizes = [2, 32], strides = [1, 1]} : vector<2x128xf32> to vector<2x32xf32>
    %222 = vector.extract_strided_slice %217 {offsets = [0, 96], sizes = [2, 32], strides = [1, 1]} : vector<2x128xf32> to vector<2x32xf32>
    %223 = arith.mulf %220, %187 : vector<2x32xf32>
    %224 = arith.mulf %219, %221 : vector<2x32xf32>
    %225 = arith.addf %223, %224 : vector<2x32xf32>
    %226 = math.tanh %225 : vector<2x32xf32>
    %227 = arith.mulf %222, %226 : vector<2x32xf32>
    %228 = math.tanh %227 : vector<2x32xf32>
    %229 = tpu.concatenate %228, %208 in 1 : vector<2x32xf32>, vector<2x32xf32> -> vector<2x64xf32>
    %cst_41 = arith.constant dense<0.000000e+00> : vector<2x128xf32>
    %230 = tpu.matmul %229, %1, %cst_41 {dimension_numbers = #tpu.dot_dimension_numbers<[1], [0], [0], [1], [0, 0, 1, 1], [], []>} : vector<2x64xf32>, vector<64x128xf32>, vector<2x128xf32> -> vector<2x128xf32>
    %231 = arith.addf %230, %12 : vector<2x128xf32>
    %232 = arith.negf %231 : vector<2x128xf32>
    %233 = math.exp %232 : vector<2x128xf32>
    %cst_42 = arith.constant 1.000000e+00 : f32
    %234 = vector.broadcast %cst_42 : f32 to vector<2x128xf32>
    %235 = arith.addf %234, %233 : vector<2x128xf32>
    %236 = arith.divf %234, %235 : vector<2x128xf32>
    %237 = math.tanh %231 : vector<2x128xf32>
    %238 = vector.extract_strided_slice %236 {offsets = [0, 0], sizes = [2, 32], strides = [1, 1]} : vector<2x128xf32> to vector<2x32xf32>
    %239 = vector.extract_strided_slice %236 {offsets = [0, 32], sizes = [2, 32], strides = [1, 1]} : vector<2x128xf32> to vector<2x32xf32>
    %240 = vector.extract_strided_slice %237 {offsets = [0, 64], sizes = [2, 32], strides = [1, 1]} : vector<2x128xf32> to vector<2x32xf32>
    %241 = vector.extract_strided_slice %236 {offsets = [0, 96], sizes = [2, 32], strides = [1, 1]} : vector<2x128xf32> to vector<2x32xf32>
    %242 = arith.mulf %239, %206 : vector<2x32xf32>
    %243 = arith.mulf %238, %240 : vector<2x32xf32>
    %244 = arith.addf %242, %243 : vector<2x32xf32>
    %245 = math.tanh %244 : vector<2x32xf32>
    %246 = arith.mulf %241, %245 : vector<2x32xf32>
    %247 = math.tanh %246 : vector<2x32xf32>
    %248 = vector.extract_strided_slice %9 {offsets = [12, 0], sizes = [2, 128], strides = [1, 1]} : vector<16x128xf32> to vector<2x128xf32>
    %cst_43 = arith.constant dense<0.000000e+00> : vector<2x128xf32>
    %249 = tpu.matmul %227, %0, %cst_43 {dimension_numbers = #tpu.dot_dimension_numbers<[1], [0], [0], [1], [0, 0, 1, 1], [], []>} : vector<2x32xf32>, vector<32x128xf32>, vector<2x128xf32> -> vector<2x128xf32>
    %250 = arith.addf %248, %249 : vector<2x128xf32>
    %251 = arith.negf %250 : vector<2x128xf32>
    %252 = math.exp %251 : vector<2x128xf32>
    %cst_44 = arith.constant 1.000000e+00 : f32
    %253 = vector.broadcast %cst_44 : f32 to vector<2x128xf32>
    %254 = arith.addf %253, %252 : vector<2x128xf32>
    %255 = arith.divf %253, %254 : vector<2x128xf32>
    %256 = math.tanh %250 : vector<2x128xf32>
    %257 = vector.extract_strided_slice %255 {offsets = [0, 0], sizes = [2, 32], strides = [1, 1]} : vector<2x128xf32> to vector<2x32xf32>
    %258 = vector.extract_strided_slice %255 {offsets = [0, 32], sizes = [2, 32], strides = [1, 1]} : vector<2x128xf32> to vector<2x32xf32>
    %259 = vector.extract_strided_slice %256 {offsets = [0, 64], sizes = [2, 32], strides = [1, 1]} : vector<2x128xf32> to vector<2x32xf32>
    %260 = vector.extract_strided_slice %255 {offsets = [0, 96], sizes = [2, 32], strides = [1, 1]} : vector<2x128xf32> to vector<2x32xf32>
    %261 = arith.mulf %258, %225 : vector<2x32xf32>
    %262 = arith.mulf %257, %259 : vector<2x32xf32>
    %263 = arith.addf %261, %262 : vector<2x32xf32>
    %264 = math.tanh %263 : vector<2x32xf32>
    %265 = arith.mulf %260, %264 : vector<2x32xf32>
    %266 = math.tanh %265 : vector<2x32xf32>
    %267 = tpu.concatenate %266, %246 in 1 : vector<2x32xf32>, vector<2x32xf32> -> vector<2x64xf32>
    %cst_45 = arith.constant dense<0.000000e+00> : vector<2x128xf32>
    %268 = tpu.matmul %267, %1, %cst_45 {dimension_numbers = #tpu.dot_dimension_numbers<[1], [0], [0], [1], [0, 0, 1, 1], [], []>} : vector<2x64xf32>, vector<64x128xf32>, vector<2x128xf32> -> vector<2x128xf32>
    %269 = arith.addf %268, %12 : vector<2x128xf32>
    %270 = arith.negf %269 : vector<2x128xf32>
    %271 = math.exp %270 : vector<2x128xf32>
    %cst_46 = arith.constant 1.000000e+00 : f32
    %272 = vector.broadcast %cst_46 : f32 to vector<2x128xf32>
    %273 = arith.addf %272, %271 : vector<2x128xf32>
    %274 = arith.divf %272, %273 : vector<2x128xf32>
    %275 = math.tanh %269 : vector<2x128xf32>
    %276 = vector.extract_strided_slice %274 {offsets = [0, 0], sizes = [2, 32], strides = [1, 1]} : vector<2x128xf32> to vector<2x32xf32>
    %277 = vector.extract_strided_slice %274 {offsets = [0, 32], sizes = [2, 32], strides = [1, 1]} : vector<2x128xf32> to vector<2x32xf32>
    %278 = vector.extract_strided_slice %275 {offsets = [0, 64], sizes = [2, 32], strides = [1, 1]} : vector<2x128xf32> to vector<2x32xf32>
    %279 = vector.extract_strided_slice %274 {offsets = [0, 96], sizes = [2, 32], strides = [1, 1]} : vector<2x128xf32> to vector<2x32xf32>
    %280 = arith.mulf %277, %244 : vector<2x32xf32>
    %281 = arith.mulf %276, %278 : vector<2x32xf32>
    %282 = arith.addf %280, %281 : vector<2x32xf32>
    %283 = math.tanh %282 : vector<2x32xf32>
    %284 = arith.mulf %279, %283 : vector<2x32xf32>
    %285 = math.tanh %284 : vector<2x32xf32>
    %286 = vector.extract_strided_slice %9 {offsets = [14, 0], sizes = [2, 128], strides = [1, 1]} : vector<16x128xf32> to vector<2x128xf32>
    %cst_47 = arith.constant dense<0.000000e+00> : vector<2x128xf32>
    %287 = tpu.matmul %265, %0, %cst_47 {dimension_numbers = #tpu.dot_dimension_numbers<[1], [0], [0], [1], [0, 0, 1, 1], [], []>} : vector<2x32xf32>, vector<32x128xf32>, vector<2x128xf32> -> vector<2x128xf32>
    %288 = arith.addf %286, %287 : vector<2x128xf32>
    %289 = arith.negf %288 : vector<2x128xf32>
    %290 = math.exp %289 : vector<2x128xf32>
    %cst_48 = arith.constant 1.000000e+00 : f32
    %291 = vector.broadcast %cst_48 : f32 to vector<2x128xf32>
    %292 = arith.addf %291, %290 : vector<2x128xf32>
    %293 = arith.divf %291, %292 : vector<2x128xf32>
    %294 = math.tanh %288 : vector<2x128xf32>
    %295 = vector.extract_strided_slice %293 {offsets = [0, 0], sizes = [2, 32], strides = [1, 1]} : vector<2x128xf32> to vector<2x32xf32>
    %296 = vector.extract_strided_slice %293 {offsets = [0, 32], sizes = [2, 32], strides = [1, 1]} : vector<2x128xf32> to vector<2x32xf32>
    %297 = vector.extract_strided_slice %294 {offsets = [0, 64], sizes = [2, 32], strides = [1, 1]} : vector<2x128xf32> to vector<2x32xf32>
    %298 = vector.extract_strided_slice %293 {offsets = [0, 96], sizes = [2, 32], strides = [1, 1]} : vector<2x128xf32> to vector<2x32xf32>
    %299 = arith.mulf %296, %263 : vector<2x32xf32>
    %300 = arith.mulf %295, %297 : vector<2x32xf32>
    %301 = arith.addf %299, %300 : vector<2x32xf32>
    %302 = math.tanh %301 : vector<2x32xf32>
    %303 = arith.mulf %298, %302 : vector<2x32xf32>
    %304 = math.tanh %303 : vector<2x32xf32>
    %305 = tpu.concatenate %304, %284 in 1 : vector<2x32xf32>, vector<2x32xf32> -> vector<2x64xf32>
    %cst_49 = arith.constant dense<0.000000e+00> : vector<2x128xf32>
    %306 = tpu.matmul %305, %1, %cst_49 {dimension_numbers = #tpu.dot_dimension_numbers<[1], [0], [0], [1], [0, 0, 1, 1], [], []>} : vector<2x64xf32>, vector<64x128xf32>, vector<2x128xf32> -> vector<2x128xf32>
    %307 = arith.addf %306, %12 : vector<2x128xf32>
    %308 = arith.negf %307 : vector<2x128xf32>
    %309 = math.exp %308 : vector<2x128xf32>
    %cst_50 = arith.constant 1.000000e+00 : f32
    %310 = vector.broadcast %cst_50 : f32 to vector<2x128xf32>
    %311 = arith.addf %310, %309 : vector<2x128xf32>
    %312 = arith.divf %310, %311 : vector<2x128xf32>
    %313 = math.tanh %307 : vector<2x128xf32>
    %314 = vector.extract_strided_slice %312 {offsets = [0, 0], sizes = [2, 32], strides = [1, 1]} : vector<2x128xf32> to vector<2x32xf32>
    %315 = vector.extract_strided_slice %312 {offsets = [0, 32], sizes = [2, 32], strides = [1, 1]} : vector<2x128xf32> to vector<2x32xf32>
    %316 = vector.extract_strided_slice %313 {offsets = [0, 64], sizes = [2, 32], strides = [1, 1]} : vector<2x128xf32> to vector<2x32xf32>
    %317 = vector.extract_strided_slice %312 {offsets = [0, 96], sizes = [2, 32], strides = [1, 1]} : vector<2x128xf32> to vector<2x32xf32>
    %318 = arith.mulf %315, %282 : vector<2x32xf32>
    %319 = arith.mulf %314, %316 : vector<2x32xf32>
    %320 = arith.addf %318, %319 : vector<2x32xf32>
    %321 = math.tanh %320 : vector<2x32xf32>
    %322 = arith.mulf %317, %321 : vector<2x32xf32>
    %323 = math.tanh %322 : vector<2x32xf32>
    %324 = tpu.concatenate %57, %95, %133, %171, %209, %247, %285, %323 in 0 : vector<2x32xf32>, vector<2x32xf32>, vector<2x32xf32>, vector<2x32xf32>, vector<2x32xf32>, vector<2x32xf32>, vector<2x32xf32>, vector<2x32xf32> -> vector<16x32xf32>
    %cst_51 = arith.constant dense<0.000000e+00> : vector<16x4xf32>
    %325 = tpu.matmul %324, %2, %cst_51 {dimension_numbers = #tpu.dot_dimension_numbers<[1], [0], [0], [1], [0, 0, 1, 1], [], []>} : vector<16x32xf32>, vector<32x4xf32>, vector<16x4xf32> -> vector<16x4xf32>
    %326 = arith.addf %325, %15 : vector<16x4xf32>
    %327 = arith.negf %326 : vector<16x4xf32>
    %328 = math.exp %327 : vector<16x4xf32>
    %cst_52 = arith.constant 1.000000e+00 : f32
    %329 = vector.broadcast %cst_52 : f32 to vector<16x4xf32>
    %330 = arith.addf %329, %328 : vector<16x4xf32>
    %331 = arith.divf %329, %330 : vector<16x4xf32>
    %c0_53 = arith.constant 0 : index
    %c0_54 = arith.constant 0 : index
    %332 = vector.load %arg9[%c0_53, %c0_54] : memref<16x4xf32, #tpu.memory_space<vmem>>, vector<16x4xf32>
    tpu.vector_store %arg9[%c0_53, %c0_54], %331 {strides = array<i32>} : memref<16x4xf32, #tpu.memory_space<vmem>>, vector<16x4xf32>,
    return
  }
  func.func @transform_0(%arg0: i32) -> (i32, i32) {
    %c0_i32 = arith.constant 0 : i32
    %c0_i32_0 = arith.constant 0 : i32
    %c0_i32_1 = arith.constant 0 : i32
    return %c0_i32, %c0_i32_0 : i32, i32
  }
  func.func @transform_1(%arg0: i32) -> (i32, i32) {
    %c0_i32 = arith.constant 0 : i32
    %c0_i32_0 = arith.constant 0 : i32
    %c0_i32_1 = arith.constant 0 : i32
    return %c0_i32, %c0_i32_0 : i32, i32
  }
  func.func @transform_2(%arg0: i32) -> (i32, i32) {
    %c0_i32 = arith.constant 0 : i32
    %c0_i32_0 = arith.constant 0 : i32
    %c0_i32_1 = arith.constant 0 : i32
    return %c0_i32, %c0_i32_0 : i32, i32
  }
  func.func @transform_3(%arg0: i32) -> (i32, i32) {
    %c0_i32 = arith.constant 0 : i32
    %c0_i32_0 = arith.constant 0 : i32
    %c0_i32_1 = arith.constant 0 : i32
    return %c0_i32, %c0_i32_0 : i32, i32
  }
  func.func @transform_4(%arg0: i32) -> (i32, i32) {
    %c0_i32 = arith.constant 0 : i32
    %c0_i32_0 = arith.constant 0 : i32
    %c0_i32_1 = arith.constant 0 : i32
    return %c0_i32, %c0_i32_0 : i32, i32
  }
  func.func @transform_5(%arg0: i32) -> (i32, i32) {
    %c0_i32 = arith.constant 0 : i32
    %c0_i32_0 = arith.constant 0 : i32
    %c0_i32_1 = arith.constant 0 : i32
    return %c0_i32, %c0_i32_0 : i32, i32
  }
  func.func @transform_6(%arg0: i32) -> (i32, i32) {
    %c0_i32 = arith.constant 0 : i32
    %c0_i32_0 = arith.constant 0 : i32
    %c0_i32_1 = arith.constant 0 : i32
    return %c0_i32, %c0_i32_0 : i32, i32
  }
  func.func @transform_7(%arg0: i32) -> (i32, i32) {
    %c0_i32 = arith.constant 0 : i32
    %c0_i32_0 = arith.constant 0 : i32
    %c0_i32_1 = arith.constant 0 : i32
    return %c0_i32, %c0_i32_0 : i32, i32
  }
  func.func @transform_8(%arg0: i32) -> (i32, i32) {
    %c0_i32 = arith.constant 0 : i32
    %c0_i32_0 = arith.constant 0 : i32
    %c0_i32_1 = arith.constant 0 : i32
    return %c0_i32, %c0_i32_0 : i32, i32
  }
}

</mosaic_0001>

<llo_original>
// kernel: tpu_custom_call.1
$region0: #{tpu_custom_call.1}
  #allocation0 [shape = 'u32[]', space=smem, size = 0x4, offset = 0x4, fixed_abs, tag = 'smem constant byte address 0x4 - core index']
  #allocation1 [shape = 'u32[144,128]{1,0:T(1,128)}', space=vmem, size = 0x12000, scoped, tag = 'internal scratch']
  %s0 = inlined_call_operand.hbm [shape: f32[16,16], index: 0, kind: input, shape index: {}]
  %s1 = inlined_call_operand.hbm [shape: f32[16,128], index: 1, kind: input, shape index: {}]
  %s2 = inlined_call_operand.vmem [shape: f32[32,128], index: 2, kind: input, shape index: {}]
  %s3 = inlined_call_operand.vmem [shape: f32[1,128], index: 3, kind: input, shape index: {}]
  %s4 = inlined_call_operand.hbm [shape: f32[64,128], index: 4, kind: input, shape index: {}]
  %s5 = inlined_call_operand.vmem [shape: f32[1,128], index: 5, kind: input, shape index: {}]
  %s6 = inlined_call_operand.vmem [shape: f32[32,4], index: 6, kind: input, shape index: {}]
  %s7 = inlined_call_operand.vmem [shape: f32[1,4], index: 7, kind: input, shape index: {}]
  %s8 = inlined_call_operand.vmem [shape: f32[16,4], index: 8, kind: output, shape index: {}]
  %s9 = sld [smem:[#allocation0]]
  $region54: #{tpu_custom_call.1} parent=0
    _
  %s11 = ssub.s32 1, %s9
  %s12 = scalar_select 0, %s11, %s9
  $region1: #{tpu_custom_call.1} parent=0
    #allocation2 [shape = 'u8[8192]{0}', space=vmem, size = 0x2000, scoped, tag = 'input window, operand 0, single buffered']
    #allocation3 [shape = 's32[1]{0}', space=sflag, size = 0x4, scoped, tag = 'scoped memory for tpu_custom_call.1']
    #allocation4 [shape = 'u8[8192]{0}', space=vmem, size = 0x2000, scoped, tag = 'input window, operand 1, single buffered']
    #allocation5 [shape = 's32[1]{0}', space=sflag, size = 0x4, scoped, tag = 'scoped memory for tpu_custom_call.1']
    #allocation6 [shape = 'u8[32768]{0}', space=vmem, size = 0x8000, scoped, tag = 'input window, operand 4, single buffered']
    %13 = vsyncpa [#allocation3], 0
    %14 = vsyncpa [#allocation5], 0
    // Predicated region
    $region2: #{tpu_custom_call.1} parent=1 // pred_check
      _
    $region3: #{tpu_custom_call.1} parent=1 // pred_check_branch
      %16 = sbr.rel (0) target = $region5
    $region4: #{tpu_custom_call.1} parent=1 // pred_region
      %s18 = ssub.s32 256, 256
      %19 = vsyncadd [#allocation3], %s18
      %s20 = sshll.u32 [#allocation2], 4
      %s21 = int_to_ptr.vmem [resolvable:$true] %s20
      %26 = dma.hbm_to_vmem [thread:$0]  %s0, 256, %s21, [#allocation3], 128, 128, 8
    $region5: #{tpu_custom_call.1} parent=1 // pred_fallthru
      _
    // Predicated region
    $region6: #{tpu_custom_call.1} parent=1 // pred_check
      _
    $region7: #{tpu_custom_call.1} parent=1 // pred_check_branch
      %28 = sbr.rel (0) target = $region9
    $region8: #{tpu_custom_call.1} parent=1 // pred_region
      %s30 = ssub.s32 256, 256
      %31 = vsyncadd [#allocation5], %s30
      %s32 = sshll.u32 [#allocation4], 4
      %s33 = int_to_ptr.vmem [resolvable:$true] %s32
      %38 = dma.hbm_to_vmem [thread:$0]  %s1, 256, %s33, [#allocation5], 128, 128, 8
    $region9: #{tpu_custom_call.1} parent=1 // pred_fallthru
      _
    // Predicated region
    $region10: #{tpu_custom_call.1} parent=1 // pred_check
      _
    $region11: #{tpu_custom_call.1} parent=1 // pred_check_branch
      %40 = sbr.rel (0) target = $region13
    $region12: #{tpu_custom_call.1} parent=1 // pred_region
      _
    $region13: #{tpu_custom_call.1} parent=1 // pred_fallthru
      _
    // Predicated region
    $region14: #{tpu_custom_call.1} parent=1 // pred_check
      _
    $region15: #{tpu_custom_call.1} parent=1 // pred_check_branch
      %42 = sbr.rel (0) target = $region17
    $region16: #{tpu_custom_call.1} parent=1 // pred_region
      _
    $region17: #{tpu_custom_call.1} parent=1 // pred_fallthru
      _
    // Predicated region
    $region18: #{tpu_custom_call.1} parent=1 // pred_check
      _
    $region19: #{tpu_custom_call.1} parent=1 // pred_check_branch
      %44 = sbr.rel (0) target = $region21
    $region20: #{tpu_custom_call.1} parent=1 // pred_region
      %s46 = ssub.s32 1024, 1024
      %47 = vsyncadd [#allocation5], %s46
      %s48 = sshll.u32 [#allocation6], 4
      %s49 = int_to_ptr.vmem [resolvable:$true] %s48
      %54 = dma.hbm_to_vmem [thread:$0]  %s4, 1024, %s49, [#allocation5], 128, 128, 8
    $region21: #{tpu_custom_call.1} parent=1 // pred_fallthru
      _
    // Predicated region
    $region22: #{tpu_custom_call.1} parent=1 // pred_check
      _
    $region23: #{tpu_custom_call.1} parent=1 // pred_check_branch
      %56 = sbr.rel (0) target = $region25
    $region24: #{tpu_custom_call.1} parent=1 // pred_region
      _
    $region25: #{tpu_custom_call.1} parent=1 // pred_fallthru
      _
    // Predicated region
    $region26: #{tpu_custom_call.1} parent=1 // pred_check
      _
    $region27: #{tpu_custom_call.1} parent=1 // pred_check_branch
      %58 = sbr.rel (0) target = $region29
    $region28: #{tpu_custom_call.1} parent=1 // pred_region
      _
    $region29: #{tpu_custom_call.1} parent=1 // pred_fallthru
      _
    // Predicated region
    $region30: #{tpu_custom_call.1} parent=1 // pred_check
      _
    $region31: #{tpu_custom_call.1} parent=1 // pred_check_branch
      %60 = sbr.rel (0) target = $region33
    $region32: #{tpu_custom_call.1} parent=1 // pred_region
      _
    $region33: #{tpu_custom_call.1} parent=1 // pred_fallthru
      _
    // Predicated region
    $region34: #{tpu_custom_call.1} parent=1 // pred_check
      _
    $region35: #{tpu_custom_call.1} parent=1 // pred_check_branch
      %62 = sbr.rel (0) target = $region37
    $region36: #{tpu_custom_call.1} parent=1 // pred_region
      %63 = dma.done [#allocation3], 256
    $region37: #{tpu_custom_call.1} parent=1 // pred_fallthru
      _
    // Predicated region
    $region38: #{tpu_custom_call.1} parent=1 // pred_check
      _
    $region39: #{tpu_custom_call.1} parent=1 // pred_check_branch
      %65 = sbr.rel (0) target = $region41
    $region40: #{tpu_custom_call.1} parent=1 // pred_region
      %66 = dma.done [#allocation5], 256
    $region41: #{tpu_custom_call.1} parent=1 // pred_fallthru
      _
    // Predicated region
    $region42: #{tpu_custom_call.1} parent=1 // pred_check
      _
    $region43: #{tpu_custom_call.1} parent=1 // pred_check_branch
      %68 = sbr.rel (0) target = $region45
    $region44: #{tpu_custom_call.1} parent=1 // pred_region
      %69 = dma.done [#allocation5], 1024
    $region45: #{tpu_custom_call.1} parent=1 // pred_fallthru
      _
    %v70 = vld [vmem:[%s2] sm:$0xff]
    %v71 = vld [vmem:[%s2 + $0x8] sm:$0xff]
    %v72 = vld [vmem:[%s2 + $0x10] sm:$0xff]
    %v73 = vld [vmem:[%s2 + $0x18] sm:$0xff]
    %v74 = vld [vmem:[#allocation6] sm:$0xff]
    %v75 = vld [vmem:[#allocation6 + $0x8] sm:$0xff]
    %v76 = vld [vmem:[#allocation6 + $0x10] sm:$0xff]
    %v77 = vld [vmem:[#allocation6 + $0x18] sm:$0xff]
    %v78 = vld [vmem:[#allocation6 + $0x20] sm:$0xff]
    %v79 = vld [vmem:[#allocation6 + $0x28] sm:$0xff]
    %v80 = vld [vmem:[#allocation6 + $0x30] sm:$0xff]
    %v81 = vld [vmem:[#allocation6 + $0x38] sm:$0xff]
    %v82 = vld [vmem:[%s6] sm:$0xff]
    %v83 = vld [vmem:[%s6 + $0x8] sm:$0xff]
    %v84 = vld [vmem:[%s6 + $0x10] sm:$0xff]
    %v85 = vld [vmem:[%s6 + $0x18] sm:$0xff]
    %v86 = vld [vmem:[#allocation2] sm:$0xff]
    %v87 = vld [vmem:[#allocation2 + $0x8] sm:$0xff]
    %v88 = vld [vmem:[#allocation4] sm:$0xff]
    %v89 = vld [vmem:[#allocation4 + $0x8] sm:$0xff]
    %v90 = vld [vmem:[%s3] sm:$0x1]
    %v92 = vlaneseq
    %v93 = vshrl.u32 %v92, 7
    %v94 = vsub.s32 0, %v93
    %v95 = vrot.slane %v90, %v94
    %vm97 = vcmask 130048
    %v99 = vsel %vm97, %v86, 0
    %v102 = vsel %vm97, %v87, 0
    %104 = vmatprep.subr.mxu0 0.0
    %105 = vmatpush1.msra.mxu0 %v88
    %106 = vmatprep.subr.mxu0 0.0
    %107 = vmatpush1.msra.mxu0 %v89
    %108 = vmatprep.subr.mxu0 0.0
    %109 = vmatpush1.msra.mxu0 0.0
    %110 = vmatprep.subr.mxu0 0.0
    %111 = vmatpush1.msra.mxu0 0.0
    %112 = vmatprep.subr.mxu0 0.0
    %113 = vmatpush1.msra.mxu0 0.0
    %114 = vmatprep.subr.mxu0 0.0
    %115 = vmatpush1.msra.mxu0 0.0
    %116 = vmatprep.subr.mxu0 0.0
    %117 = vmatpush1.msra.mxu0 0.0
    %118 = vmatprep.subr.mxu0 0.0
    %119 = vmatpush1.msra.mxu0 0.0
    %120 = vmatprep.subr.mxu0 0.0
    %121 = vmatpush1.msra.mxu0 0.0
    %122 = vmatprep.subr.mxu0 0.0
    %123 = vmatpush1.msra.mxu0 0.0
    %124 = vmatprep.subr.mxu0 0.0
    %125 = vmatpush1.msra.mxu0 0.0
    %126 = vmatprep.subr.mxu0 0.0
    %127 = vmatpush1.msra.mxu0 0.0
    %128 = vmatprep.subr.mxu0 0.0
    %129 = vmatpush1.msra.mxu0 0.0
    %130 = vmatprep.subr.mxu0 0.0
    %131 = vmatpush1.msra.mxu0 0.0
    %132 = vmatprep.subr.mxu0 0.0
    %133 = vmatpush1.msra.mxu0 0.0
    %134 = vmatprep.subr.mxu0 0.0
    %135 = vmatpush1.msra.mxu0 0.0
    %136 = vmatprep.subr.mxu0 0.0
    %137 = vmatpush1.msra.mxu0 0.0
    %138 = vmatprep.subr.mxu0 0.0
    %139 = vmatpush1.msra.mxu0 0.0
    %140 = vmatprep.subr.mxu0 0.0
    %141 = vmatpush1.msra.mxu0 0.0
    %142 = vmatprep.subr.mxu0 0.0
    %143 = vmatpush1.msra.mxu0 0.0
    %144 = vmatprep.subr.mxu0 0.0
    %145 = vmatpush1.msra.mxu0 0.0
    %146 = vmatprep.subr.mxu0 0.0
    %147 = vmatpush1.msra.mxu0 0.0
    %148 = vmatprep.subr.mxu0 0.0
    %149 = vmatpush1.msra.mxu0 0.0
    %150 = vmatprep.subr.mxu0 0.0
    %151 = vmatpush1.msra.mxu0 0.0
    %152 = vmatprep.subr.mxu0 0.0
    %153 = vmatpush1.msra.mxu0 0.0
    %154 = vmatprep.subr.mxu0 0.0
    %155 = vmatpush1.msra.mxu0 0.0
    %156 = vmatprep.subr.mxu0 0.0
    %157 = vmatpush1.msra.mxu0 0.0
    %158 = vmatprep.subr.mxu0 0.0
    %159 = vmatpush1.msra.mxu0 0.0
    %160 = vmatprep.subr.mxu0 0.0
    %161 = vmatpush1.msra.mxu0 0.0
    %162 = vmatprep.subr.mxu0 0.0
    %163 = vmatpush1.msra.mxu0 0.0
    %164 = vmatprep.subr.mxu0 0.0
    %165 = vmatpush1.msra.mxu0 0.0
    %166 = vmatprep.subr.mxu0 0.0
    %167 = vmatpush1.msra.mxu0 0.0
    %168 = vmatprep.mubr.f32.mxu0 0.0
    %169 = vmatmul.mubr.f32.gmra.mrb[0].mxu0 %v99
    %v170 = vpop.f32.mrb[0].mxu0
    %v171 = vadd.f32 %v95, %v170
    %v172 = vpop.f32.mrb[0].mxu0
    %173 = vmatprep.mubr.f32.mxu0 0.0
    %174 = vmatmul.mubr.f32.gmra.mrb[0].mxu0 %v102
    %v175 = vpop.f32.mrb[0].mxu0
    %v176 = vadd.f32 %v95, %v175
    %v177 = vpop.f32.mrb[0].mxu0
    %178 = vdwg.mxu0
    %v179 = vld [vmem:[%s5] sm:$0x1]
    %v181 = vlaneseq
    %v182 = vshrl.u32 %v181, 7
    %v183 = vsub.s32 0, %v182
    %v184 = vrot.slane %v179, %v183
    %v186 = vld [vmem:[%s7] sm:$0x1]
    %v188 = vlaneseq
    %v189 = vshrl.u32 %v188, 7
    %v190 = vsub.s32 0, %v189
    %v191 = vrot.slane %v186, %v190
    %vm193 = vcmask 261120
    %v195 = vsel %vm193, 0.0, 0
    %197 = vmatprep.subr.mxu0 0.0
    %198 = vmatpush1.msra.mxu0 %v70
    %199 = vmatprep.subr.mxu0 0.0
    %200 = vmatpush1.msra.mxu0 %v71
    %201 = vmatprep.subr.mxu0 0.0
    %202 = vmatpush1.msra.mxu0 %v72
    %203 = vmatprep.subr.mxu0 0.0
    %204 = vmatpush1.msra.mxu0 %v73
    %205 = vmatprep.subr.mxu0 0.0
    %206 = vmatpush1.msra.mxu0 0.0
    %207 = vmatprep.subr.mxu0 0.0
    %208 = vmatpush1.msra.mxu0 0.0
    %209 = vmatprep.subr.mxu0 0.0
    %210 = vmatpush1.msra.mxu0 0.0
    %211 = vmatprep.subr.mxu0 0.0
    %212 = vmatpush1.msra.mxu0 0.0
    %213 = vmatprep.subr.mxu0 0.0
    %214 = vmatpush1.msra.mxu0 0.0
    %215 = vmatprep.subr.mxu0 0.0
    %216 = vmatpush1.msra.mxu0 0.0
    %217 = vmatprep.subr.mxu0 0.0
    %218 = vmatpush1.msra.mxu0 0.0
    %219 = vmatprep.subr.mxu0 0.0
    %220 = vmatpush1.msra.mxu0 0.0
    %221 = vmatprep.subr.mxu0 0.0
    %222 = vmatpush1.msra.mxu0 0.0
    %223 = vmatprep.subr.mxu0 0.0
    %224 = vmatpush1.msra.mxu0 0.0
    %225 = vmatprep.subr.mxu0 0.0
    %226 = vmatpush1.msra.mxu0 0.0
    %227 = vmatprep.subr.mxu0 0.0
    %228 = vmatpush1.msra.mxu0 0.0
    %229 = vmatprep.subr.mxu0 0.0
    %230 = vmatpush1.msra.mxu0 0.0
    %231 = vmatprep.subr.mxu0 0.0
    %232 = vmatpush1.msra.mxu0 0.0
    %233 = vmatprep.subr.mxu0 0.0
    %234 = vmatpush1.msra.mxu0 0.0
    %235 = vmatprep.subr.mxu0 0.0
    %236 = vmatpush1.msra.mxu0 0.0
    %237 = vmatprep.subr.mxu0 0.0
    %238 = vmatpush1.msra.mxu0 0.0
    %239 = vmatprep.subr.mxu0 0.0
    %240 = vmatpush1.msra.mxu0 0.0
    %241 = vmatprep.subr.mxu0 0.0
    %242 = vmatpush1.msra.mxu0 0.0
    %243 = vmatprep.subr.mxu0 0.0
    %244 = vmatpush1.msra.mxu0 0.0
    %245 = vmatprep.subr.mxu0 0.0
    %246 = vmatpush1.msra.mxu0 0.0
    %247 = vmatprep.subr.mxu0 0.0
    %248 = vmatpush1.msra.mxu0 0.0
    %249 = vmatprep.subr.mxu0 0.0
    %250 = vmatpush1.msra.mxu0 0.0
    %251 = vmatprep.subr.mxu0 0.0
    %252 = vmatpush1.msra.mxu0 0.0
    %253 = vmatprep.subr.mxu0 0.0
    %254 = vmatpush1.msra.mxu0 0.0
    %255 = vmatprep.subr.mxu0 0.0
    %256 = vmatpush1.msra.mxu0 0.0
    %257 = vmatprep.subr.mxu0 0.0
    %258 = vmatpush1.msra.mxu0 0.0
    %259 = vmatprep.subr.mxu0 0.0
    %260 = vmatpush1.msra.mxu0 0.0
    %261 = vmatprep.mubr.f32.mxu0 0.0
    %262 = vmatmul.mubr.f32.gmra.mrb[0].mxu0 %v195
    %v263 = vpop.f32.mrb[0].mxu0
    %v264 = vadd.f32 0.0, %v263
    %v265 = vpop.f32.mrb[0].mxu0
    %266 = vdwg.mxu0
    %v267 = vadd.f32 %v171, %v264
    %v268 = vxor.u32 %v267, 2147483648
    %v269 = vmul.f32 %v268, 1.442695
    %v270 = vpow.pop %v269
    %v271 = vadd.f32 %v270, 1.0
    %v272 = vrcp.pop %v271
    %v273 = vmul.f32 1.0, %v272
    %v274 = vtanh.pop %v267
    %v275 = vmul.f32 %v273, 0.0
    %277 = vrot.lane.b32.xlu0 %v274, 64
    %v278 = vpop.permute.xlu0 %277
    %v280 = vmul.f32 %v273, %v278
    %282 = vrot.lane.b32.xlu0 %v280, 32
    %v283 = vpop.permute.xlu0 %282
    %v285 = vadd.f32 %v275, %v283
    %v286 = vtanh.pop %v285
    %288 = vrot.lane.b32.xlu0 %v286, 64
    %v289 = vpop.permute.xlu0 %288
    %v291 = vmul.f32 %v273, %v289
    %v292 = vtanh.pop %v291
    %294 = vrot.lane.b32.xlu0 %v292, 32
    %v295 = vpop.permute.xlu0 %294
    %v297 = vsel %vm193, %v295, 0.0
    %vm298 = vcmask 523264
    %v300 = vsel %vm298, %v297, 0
    %302 = vmatprep.subr.mxu0 0.0
    %303 = vmatpush1.msra.mxu0 %v74
    %304 = vmatprep.subr.mxu0 0.0
    %305 = vmatpush1.msra.mxu0 %v75
    %306 = vmatprep.subr.mxu0 0.0
    %307 = vmatpush1.msra.mxu0 %v76
    %308 = vmatprep.subr.mxu0 0.0
    %309 = vmatpush1.msra.mxu0 %v77
    %310 = vmatprep.subr.mxu0 0.0
    %311 = vmatpush1.msra.mxu0 %v78
    %312 = vmatprep.subr.mxu0 0.0
    %313 = vmatpush1.msra.mxu0 %v79
    %314 = vmatprep.subr.mxu0 0.0
    %315 = vmatpush1.msra.mxu0 %v80
    %316 = vmatprep.subr.mxu0 0.0
    %317 = vmatpush1.msra.mxu0 %v81
    %318 = vmatprep.subr.mxu0 0.0
    %319 = vmatpush1.msra.mxu0 0.0
    %320 = vmatprep.subr.mxu0 0.0
    %321 = vmatpush1.msra.mxu0 0.0
    %322 = vmatprep.subr.mxu0 0.0
    %323 = vmatpush1.msra.mxu0 0.0
    %324 = vmatprep.subr.mxu0 0.0
    %325 = vmatpush1.msra.mxu0 0.0
    %326 = vmatprep.subr.mxu0 0.0
    %327 = vmatpush1.msra.mxu0 0.0
    %328 = vmatprep.subr.mxu0 0.0
    %329 = vmatpush1.msra.mxu0 0.0
    %330 = vmatprep.subr.mxu0 0.0
    %331 = vmatpush1.msra.mxu0 0.0
    %332 = vmatprep.subr.mxu0 0.0
    %333 = vmatpush1.msra.mxu0 0.0
    %334 = vmatprep.subr.mxu0 0.0
    %335 = vmatpush1.msra.mxu0 0.0
    %336 = vmatprep.subr.mxu0 0.0
    %337 = vmatpush1.msra.mxu0 0.0
    %338 = vmatprep.subr.mxu0 0.0
    %339 = vmatpush1.msra.mxu0 0.0
    %340 = vmatprep.subr.mxu0 0.0
    %341 = vmatpush1.msra.mxu0 0.0
    %342 = vmatprep.subr.mxu0 0.0
    %343 = vmatpush1.msra.mxu0 0.0
    %344 = vmatprep.subr.mxu0 0.0
    %345 = vmatpush1.msra.mxu0 0.0
    %346 = vmatprep.subr.mxu0 0.0
    %347 = vmatpush1.msra.mxu0 0.0
    %348 = vmatprep.subr.mxu0 0.0
    %349 = vmatpush1.msra.mxu0 0.0
    %350 = vmatprep.subr.mxu0 0.0
    %351 = vmatpush1.msra.mxu0 0.0
    %352 = vmatprep.subr.mxu0 0.0
    %353 = vmatpush1.msra.mxu0 0.0
    %354 = vmatprep.subr.mxu0 0.0
    %355 = vmatpush1.msra.mxu0 0.0
    %356 = vmatprep.subr.mxu0 0.0
    %357 = vmatpush1.msra.mxu0 0.0
    %358 = vmatprep.subr.mxu0 0.0
    %359 = vmatpush1.msra.mxu0 0.0
    %360 = vmatprep.subr.mxu0 0.0
    %361 = vmatpush1.msra.mxu0 0.0
    %362 = vmatprep.subr.mxu0 0.0
    %363 = vmatpush1.msra.mxu0 0.0
    %364 = vmatprep.subr.mxu0 0.0
    %365 = vmatpush1.msra.mxu0 0.0
    %366 = vmatprep.mubr.f32.mxu0 0.0
    %367 = vmatmul.mubr.f32.gmra.mrb[0].mxu0 %v300
    %v368 = vpop.f32.mrb[0].mxu0
    %v369 = vadd.f32 %v184, %v368
    %v370 = vpop.f32.mrb[0].mxu0
    %371 = vdwg.mxu0
    %v372 = vxor.u32 %v369, 2147483648
    %v373 = vmul.f32 %v372, 1.442695
    %v374 = vpow.pop %v373
    %v375 = vadd.f32 %v374, 1.0
    %v376 = vrcp.pop %v375
    %v377 = vmul.f32 1.0, %v376
    %v378 = vtanh.pop %v369
    %v379 = vmul.f32 %v377, 0.0
    %381 = vrot.lane.b32.xlu0 %v378, 64
    %v382 = vpop.permute.xlu0 %381
    %v384 = vmul.f32 %v377, %v382
    %386 = vrot.lane.b32.xlu0 %v384, 32
    %v387 = vpop.permute.xlu0 %386
    %v389 = vadd.f32 %v379, %v387
    %v390 = vtanh.pop %v389
    %392 = vrot.lane.b32.xlu0 %v390, 64
    %v393 = vpop.permute.xlu0 %392
    %v395 = vmul.f32 %v377, %v393
    %v396 = vtanh.pop %v395
    %398 = vrot.lane.b32.xlu0 %v291, 32
    %v399 = vpop.permute.xlu0 %398
    %v400 = vsel %vm193, %v399, 0
    %402 = vmatprep.subr.mxu0 0.0
    %403 = vmatpush1.msra.mxu0 %v70
    %404 = vmatprep.subr.mxu0 0.0
    %405 = vmatpush1.msra.mxu0 %v71
    %406 = vmatprep.subr.mxu0 0.0
    %407 = vmatpush1.msra.mxu0 %v72
    %408 = vmatprep.subr.mxu0 0.0
    %409 = vmatpush1.msra.mxu0 %v73
    %410 = vmatprep.subr.mxu0 0.0
    %411 = vmatpush1.msra.mxu0 0.0
    %412 = vmatprep.subr.mxu0 0.0
    %413 = vmatpush1.msra.mxu0 0.0
    %414 = vmatprep.subr.mxu0 0.0
    %415 = vmatpush1.msra.mxu0 0.0
    %416 = vmatprep.subr.mxu0 0.0
    %417 = vmatpush1.msra.mxu0 0.0
    %418 = vmatprep.subr.mxu0 0.0
    %419 = vmatpush1.msra.mxu0 0.0
    %420 = vmatprep.subr.mxu0 0.0
    %421 = vmatpush1.msra.mxu0 0.0
    %422 = vmatprep.subr.mxu0 0.0
    %423 = vmatpush1.msra.mxu0 0.0
    %424 = vmatprep.subr.mxu0 0.0
    %425 = vmatpush1.msra.mxu0 0.0
    %426 = vmatprep.subr.mxu0 0.0
    %427 = vmatpush1.msra.mxu0 0.0
    %428 = vmatprep.subr.mxu0 0.0
    %429 = vmatpush1.msra.mxu0 0.0
    %430 = vmatprep.subr.mxu0 0.0
    %431 = vmatpush1.msra.mxu0 0.0
    %432 = vmatprep.subr.mxu0 0.0
    %433 = vmatpush1.msra.mxu0 0.0
    %434 = vmatprep.subr.mxu0 0.0
    %435 = vmatpush1.msra.mxu0 0.0
    %436 = vmatprep.subr.mxu0 0.0
    %437 = vmatpush1.msra.mxu0 0.0
    %438 = vmatprep.subr.mxu0 0.0
    %439 = vmatpush1.msra.mxu0 0.0
    %440 = vmatprep.subr.mxu0 0.0
    %441 = vmatpush1.msra.mxu0 0.0
    %442 = vmatprep.subr.mxu0 0.0
    %443 = vmatpush1.msra.mxu0 0.0
    %444 = vmatprep.subr.mxu0 0.0
    %445 = vmatpush1.msra.mxu0 0.0
    %446 = vmatprep.subr.mxu0 0.0
    %447 = vmatpush1.msra.mxu0 0.0
    %448 = vmatprep.subr.mxu0 0.0
    %449 = vmatpush1.msra.mxu0 0.0
    %450 = vmatprep.subr.mxu0 0.0
    %451 = vmatpush1.msra.mxu0 0.0
    %452 = vmatprep.subr.mxu0 0.0
    %453 = vmatpush1.msra.mxu0 0.0
    %454 = vmatprep.subr.mxu0 0.0
    %455 = vmatpush1.msra.mxu0 0.0
    %456 = vmatprep.subr.mxu0 0.0
    %457 = vmatpush1.msra.mxu0 0.0
    %458 = vmatprep.subr.mxu0 0.0
    %459 = vmatpush1.msra.mxu0 0.0
    %460 = vmatprep.subr.mxu0 0.0
    %461 = vmatpush1.msra.mxu0 0.0
    %462 = vmatprep.subr.mxu0 0.0
    %463 = vmatpush1.msra.mxu0 0.0
    %464 = vmatprep.subr.mxu0 0.0
    %465 = vmatpush1.msra.mxu0 0.0
    %466 = vmatprep.mubr.f32.mxu0 0.0
    %467 = vmatmul.mubr.f32.gmra.mrb[0].mxu0 %v400
    %v468 = vpop.f32.mrb[0].mxu0
    %v469 = vadd.f32 0.0, %v468
    %v470 = vpop.f32.mrb[0].mxu0
    %471 = vdwg.mxu0
    %v473 = vrot.slane %v469, 6
    %v475 = vadd.f32 %v171, %v473
    %v476 = vxor.u32 %v475, 2147483648
    %v477 = vmul.f32 %v476, 1.442695
    %v478 = vpow.pop %v477
    %v479 = vadd.f32 %v478, 1.0
    %v480 = vrcp.pop %v479
    %v481 = vmul.f32 1.0, %v480
    %v482 = vtanh.pop %v475
    %v484 = vrot.slane %v285, 6
    %v486 = vmul.f32 %v481, %v484
    %488 = vrot.lane.b32.xlu0 %v482, 64
    %v489 = vpop.permute.xlu0 %488
    %v491 = vmul.f32 %v481, %v489
    %493 = vrot.lane.b32.xlu0 %v491, 32
    %v494 = vpop.permute.xlu0 %493
    %v496 = vadd.f32 %v486, %v494
    %v497 = vtanh.pop %v496
    %499 = vrot.lane.b32.xlu0 %v497, 64
    %v500 = vpop.permute.xlu0 %499
    %v502 = vmul.f32 %v481, %v500
    %v503 = vtanh.pop %v502
    %505 = vrot.lane.b32.xlu0 %v503, 32
    %v506 = vpop.permute.xlu0 %505
    %v509 = vrot.slane %v395, 6
    %510 = vrot.lane.b32.xlu0 %v509, 64
    %v511 = vpop.permute.xlu0 %510
    %v513 = vsel %vm193, %v506, %v511
    %v515 = vrot.slane %v513, 2
    %v516 = vsel %vm298, %v515, 0
    %518 = vmatprep.subr.mxu0 0.0
    %519 = vmatpush1.msra.mxu0 %v74
    %520 = vmatprep.subr.mxu0 0.0
    %521 = vmatpush1.msra.mxu0 %v75
    %522 = vmatprep.subr.mxu0 0.0
    %523 = vmatpush1.msra.mxu0 %v76
    %524 = vmatprep.subr.mxu0 0.0
    %525 = vmatpush1.msra.mxu0 %v77
    %526 = vmatprep.subr.mxu0 0.0
    %527 = vmatpush1.msra.mxu0 %v78
    %528 = vmatprep.subr.mxu0 0.0
    %529 = vmatpush1.msra.mxu0 %v79
    %530 = vmatprep.subr.mxu0 0.0
    %531 = vmatpush1.msra.mxu0 %v80
    %532 = vmatprep.subr.mxu0 0.0
    %533 = vmatpush1.msra.mxu0 %v81
    %534 = vmatprep.subr.mxu0 0.0
    %535 = vmatpush1.msra.mxu0 0.0
    %536 = vmatprep.subr.mxu0 0.0
    %537 = vmatpush1.msra.mxu0 0.0
    %538 = vmatprep.subr.mxu0 0.0
    %539 = vmatpush1.msra.mxu0 0.0
    %540 = vmatprep.subr.mxu0 0.0
    %541 = vmatpush1.msra.mxu0 0.0
    %542 = vmatprep.subr.mxu0 0.0
    %543 = vmatpush1.msra.mxu0 0.0
    %544 = vmatprep.subr.mxu0 0.0
    %545 = vmatpush1.msra.mxu0 0.0
    %546 = vmatprep.subr.mxu0 0.0
    %547 = vmatpush1.msra.mxu0 0.0
    %548 = vmatprep.subr.mxu0 0.0
    %549 = vmatpush1.msra.mxu0 0.0
    %550 = vmatprep.subr.mxu0 0.0
    %551 = vmatpush1.msra.mxu0 0.0
    %552 = vmatprep.subr.mxu0 0.0
    %553 = vmatpush1.msra.mxu0 0.0
    %554 = vmatprep.subr.mxu0 0.0
    %555 = vmatpush1.msra.mxu0 0.0
    %556 = vmatprep.subr.mxu0 0.0
    %557 = vmatpush1.msra.mxu0 0.0
    %558 = vmatprep.subr.mxu0 0.0
    %559 = vmatpush1.msra.mxu0 0.0
    %560 = vmatprep.subr.mxu0 0.0
    %561 = vmatpush1.msra.mxu0 0.0
    %562 = vmatprep.subr.mxu0 0.0
    %563 = vmatpush1.msra.mxu0 0.0
    %564 = vmatprep.subr.mxu0 0.0
    %565 = vmatpush1.msra.mxu0 0.0
    %566 = vmatprep.subr.mxu0 0.0
    %567 = vmatpush1.msra.mxu0 0.0
    %568 = vmatprep.subr.mxu0 0.0
    %569 = vmatpush1.msra.mxu0 0.0
    %570 = vmatprep.subr.mxu0 0.0
    %571 = vmatpush1.msra.mxu0 0.0
    %572 = vmatprep.subr.mxu0 0.0
    %573 = vmatpush1.msra.mxu0 0.0
    %574 = vmatprep.subr.mxu0 0.0
    %575 = vmatpush1.msra.mxu0 0.0
    %576 = vmatprep.subr.mxu0 0.0
    %577 = vmatpush1.msra.mxu0 0.0
    %578 = vmatprep.subr.mxu0 0.0
    %579 = vmatpush1.msra.mxu0 0.0
    %580 = vmatprep.subr.mxu0 0.0
    %581 = vmatpush1.msra.mxu0 0.0
    %582 = vmatprep.mubr.f32.mxu0 0.0
    %583 = vmatmul.mubr.f32.gmra.mrb[0].mxu0 %v516
    %v584 = vpop.f32.mrb[0].mxu0
    %v585 = vadd.f32 %v184, %v584
    %v586 = vpop.f32.mrb[0].mxu0
    %587 = vdwg.mxu0
    %v588 = vxor.u32 %v585, 2147483648
    %v589 = vmul.f32 %v588, 1.442695
    %v590 = vpow.pop %v589
    %v591 = vadd.f32 %v590, 1.0
    %v592 = vrcp.pop %v591
    %v593 = vmul.f32 1.0, %v592
    %v594 = vtanh.pop %v585
    %v595 = vmul.f32 %v593, %v389
    %597 = vrot.lane.b32.xlu0 %v594, 64
    %v598 = vpop.permute.xlu0 %597
    %v600 = vmul.f32 %v593, %v598
    %602 = vrot.lane.b32.xlu0 %v600, 32
    %v603 = vpop.permute.xlu0 %602
    %v605 = vadd.f32 %v595, %v603
    %v606 = vtanh.pop %v605
    %608 = vrot.lane.b32.xlu0 %v606, 64
    %v609 = vpop.permute.xlu0 %608
    %v611 = vmul.f32 %v593, %v609
    %v612 = vtanh.pop %v611
    %v614 = vrot.slane %v502, 2
    %615 = vrot.lane.b32.xlu0 %v614, 32
    %v616 = vpop.permute.xlu0 %615
    %v617 = vsel %vm193, %v616, 0
    %619 = vmatprep.subr.mxu0 0.0
    %620 = vmatpush1.msra.mxu0 %v70
    %621 = vmatprep.subr.mxu0 0.0
    %622 = vmatpush1.msra.mxu0 %v71
    %623 = vmatprep.subr.mxu0 0.0
    %624 = vmatpush1.msra.mxu0 %v72
    %625 = vmatprep.subr.mxu0 0.0
    %626 = vmatpush1.msra.mxu0 %v73
    %627 = vmatprep.subr.mxu0 0.0
    %628 = vmatpush1.msra.mxu0 0.0
    %629 = vmatprep.subr.mxu0 0.0
    %630 = vmatpush1.msra.mxu0 0.0
    %631 = vmatprep.subr.mxu0 0.0
    %632 = vmatpush1.msra.mxu0 0.0
    %633 = vmatprep.subr.mxu0 0.0
    %634 = vmatpush1.msra.mxu0 0.0
    %635 = vmatprep.subr.mxu0 0.0
    %636 = vmatpush1.msra.mxu0 0.0
    %637 = vmatprep.subr.mxu0 0.0
    %638 = vmatpush1.msra.mxu0 0.0
    %639 = vmatprep.subr.mxu0 0.0
    %640 = vmatpush1.msra.mxu0 0.0
    %641 = vmatprep.subr.mxu0 0.0
    %642 = vmatpush1.msra.mxu0 0.0
    %643 = vmatprep.subr.mxu0 0.0
    %644 = vmatpush1.msra.mxu0 0.0
    %645 = vmatprep.subr.mxu0 0.0
    %646 = vmatpush1.msra.mxu0 0.0
    %647 = vmatprep.subr.mxu0 0.0
    %648 = vmatpush1.msra.mxu0 0.0
    %649 = vmatprep.subr.mxu0 0.0
    %650 = vmatpush1.msra.mxu0 0.0
    %651 = vmatprep.subr.mxu0 0.0
    %652 = vmatpush1.msra.mxu0 0.0
    %653 = vmatprep.subr.mxu0 0.0
    %654 = vmatpush1.msra.mxu0 0.0
    %655 = vmatprep.subr.mxu0 0.0
    %656 = vmatpush1.msra.mxu0 0.0
    %657 = vmatprep.subr.mxu0 0.0
    %658 = vmatpush1.msra.mxu0 0.0
    %659 = vmatprep.subr.mxu0 0.0
    %660 = vmatpush1.msra.mxu0 0.0
    %661 = vmatprep.subr.mxu0 0.0
    %662 = vmatpush1.msra.mxu0 0.0
    %663 = vmatprep.subr.mxu0 0.0
    %664 = vmatpush1.msra.mxu0 0.0
    %665 = vmatprep.subr.mxu0 0.0
    %666 = vmatpush1.msra.mxu0 0.0
    %667 = vmatprep.subr.mxu0 0.0
    %668 = vmatpush1.msra.mxu0 0.0
    %669 = vmatprep.subr.mxu0 0.0
    %670 = vmatpush1.msra.mxu0 0.0
    %671 = vmatprep.subr.mxu0 0.0
    %672 = vmatpush1.msra.mxu0 0.0
    %673 = vmatprep.subr.mxu0 0.0
    %674 = vmatpush1.msra.mxu0 0.0
    %675 = vmatprep.subr.mxu0 0.0
    %676 = vmatpush1.msra.mxu0 0.0
    %677 = vmatprep.subr.mxu0 0.0
    %678 = vmatpush1.msra.mxu0 0.0
    %679 = vmatprep.subr.mxu0 0.0
    %680 = vmatpush1.msra.mxu0 0.0
    %681 = vmatprep.subr.mxu0 0.0
    %682 = vmatpush1.msra.mxu0 0.0
    %683 = vmatprep.mubr.f32.mxu0 0.0
    %684 = vmatmul.mubr.f32.gmra.mrb[0].mxu0 %v617
    %v685 = vpop.f32.mrb[0].mxu0
    %v686 = vadd.f32 0.0, %v685
    %v687 = vpop.f32.mrb[0].mxu0
    %688 = vdwg.mxu0
    %v690 = vrot.slane %v686, 4
    %v692 = vadd.f32 %v171, %v690
    %v693 = vxor.u32 %v692, 2147483648
    %v694 = vmul.f32 %v693, 1.442695
    %v695 = vpow.pop %v694
    %v696 = vadd.f32 %v695, 1.0
    %v697 = vrcp.pop %v696
    %v698 = vmul.f32 1.0, %v697
    %v699 = vtanh.pop %v692
    %v701 = vrot.slane %v496, 6
    %v703 = vmul.f32 %v698, %v701
    %705 = vrot.lane.b32.xlu0 %v699, 64
    %v706 = vpop.permute.xlu0 %705
    %v708 = vmul.f32 %v698, %v706
    %710 = vrot.lane.b32.xlu0 %v708, 32
    %v711 = vpop.permute.xlu0 %710
    %v713 = vadd.f32 %v703, %v711
    %v714 = vtanh.pop %v713
    %716 = vrot.lane.b32.xlu0 %v714, 64
    %v717 = vpop.permute.xlu0 %716
    %v719 = vmul.f32 %v698, %v717
    %v720 = vtanh.pop %v719
    %722 = vrot.lane.b32.xlu0 %v720, 32
    %v723 = vpop.permute.xlu0 %722
    %v726 = vrot.slane %v611, 4
    %727 = vrot.lane.b32.xlu0 %v726, 64
    %v728 = vpop.permute.xlu0 %727
    %v730 = vsel %vm193, %v723, %v728
    %v732 = vrot.slane %v730, 4
    %v733 = vsel %vm298, %v732, 0
    %735 = vmatprep.subr.mxu0 0.0
    %736 = vmatpush1.msra.mxu0 %v74
    %737 = vmatprep.subr.mxu0 0.0
    %738 = vmatpush1.msra.mxu0 %v75
    %739 = vmatprep.subr.mxu0 0.0
    %740 = vmatpush1.msra.mxu0 %v76
    %741 = vmatprep.subr.mxu0 0.0
    %742 = vmatpush1.msra.mxu0 %v77
    %743 = vmatprep.subr.mxu0 0.0
    %744 = vmatpush1.msra.mxu0 %v78
    %745 = vmatprep.subr.mxu0 0.0
    %746 = vmatpush1.msra.mxu0 %v79
    %747 = vmatprep.subr.mxu0 0.0
    %748 = vmatpush1.msra.mxu0 %v80
    %749 = vmatprep.subr.mxu0 0.0
    %750 = vmatpush1.msra.mxu0 %v81
    %751 = vmatprep.subr.mxu0 0.0
    %752 = vmatpush1.msra.mxu0 0.0
    %753 = vmatprep.subr.mxu0 0.0
    %754 = vmatpush1.msra.mxu0 0.0
    %755 = vmatprep.subr.mxu0 0.0
    %756 = vmatpush1.msra.mxu0 0.0
    %757 = vmatprep.subr.mxu0 0.0
    %758 = vmatpush1.msra.mxu0 0.0
    %759 = vmatprep.subr.mxu0 0.0
    %760 = vmatpush1.msra.mxu0 0.0
    %761 = vmatprep.subr.mxu0 0.0
    %762 = vmatpush1.msra.mxu0 0.0
    %763 = vmatprep.subr.mxu0 0.0
    %764 = vmatpush1.msra.mxu0 0.0
    %765 = vmatprep.subr.mxu0 0.0
    %766 = vmatpush1.msra.mxu0 0.0
    %767 = vmatprep.subr.mxu0 0.0
    %768 = vmatpush1.msra.mxu0 0.0
    %769 = vmatprep.subr.mxu0 0.0
    %770 = vmatpush1.msra.mxu0 0.0
    %771 = vmatprep.subr.mxu0 0.0
    %772 = vmatpush1.msra.mxu0 0.0
    %773 = vmatprep.subr.mxu0 0.0
    %774 = vmatpush1.msra.mxu0 0.0
    %775 = vmatprep.subr.mxu0 0.0
    %776 = vmatpush1.msra.mxu0 0.0
    %777 = vmatprep.subr.mxu0 0.0
    %778 = vmatpush1.msra.mxu0 0.0
    %779 = vmatprep.subr.mxu0 0.0
    %780 = vmatpush1.msra.mxu0 0.0
    %781 = vmatprep.subr.mxu0 0.0
    %782 = vmatpush1.msra.mxu0 0.0
    %783 = vmatprep.subr.mxu0 0.0
    %784 = vmatpush1.msra.mxu0 0.0
    %785 = vmatprep.subr.mxu0 0.0
    %786 = vmatpush1.msra.mxu0 0.0
    %787 = vmatprep.subr.mxu0 0.0
    %788 = vmatpush1.msra.mxu0 0.0
    %789 = vmatprep.subr.mxu0 0.0
    %790 = vmatpush1.msra.mxu0 0.0
    %791 = vmatprep.subr.mxu0 0.0
    %792 = vmatpush1.msra.mxu0 0.0
    %793 = vmatprep.subr.mxu0 0.0
    %794 = vmatpush1.msra.mxu0 0.0
    %795 = vmatprep.subr.mxu0 0.0
    %796 = vmatpush1.msra.mxu0 0.0
    %797 = vmatprep.subr.mxu0 0.0
    %798 = vmatpush1.msra.mxu0 0.0
    %799 = vmatprep.mubr.f32.mxu0 0.0
    %800 = vmatmul.mubr.f32.gmra.mrb[0].mxu0 %v733
    %v801 = vpop.f32.mrb[0].mxu0
    %v802 = vadd.f32 %v184, %v801
    %v803 = vpop.f32.mrb[0].mxu0
    %804 = vdwg.mxu0
    %v805 = vxor.u32 %v802, 2147483648
    %v806 = vmul.f32 %v805, 1.442695
    %v807 = vpow.pop %v806
    %v808 = vadd.f32 %v807, 1.0
    %v809 = vrcp.pop %v808
    %v810 = vmul.f32 1.0, %v809
    %v811 = vtanh.pop %v802
    %v812 = vmul.f32 %v810, %v605
    %814 = vrot.lane.b32.xlu0 %v811, 64
    %v815 = vpop.permute.xlu0 %814
    %v817 = vmul.f32 %v810, %v815
    %819 = vrot.lane.b32.xlu0 %v817, 32
    %v820 = vpop.permute.xlu0 %819
    %v822 = vadd.f32 %v812, %v820
    %v823 = vtanh.pop %v822
    %825 = vrot.lane.b32.xlu0 %v823, 64
    %v826 = vpop.permute.xlu0 %825
    %v828 = vmul.f32 %v810, %v826
    %v829 = vtanh.pop %v828
    %v831 = vrot.slane %v719, 4
    %832 = vrot.lane.b32.xlu0 %v831, 32
    %v833 = vpop.permute.xlu0 %832
    %v834 = vsel %vm193, %v833, 0
    %836 = vmatprep.subr.mxu0 0.0
    %837 = vmatpush1.msra.mxu0 %v70
    %838 = vmatprep.subr.mxu0 0.0
    %839 = vmatpush1.msra.mxu0 %v71
    %840 = vmatprep.subr.mxu0 0.0
    %841 = vmatpush1.msra.mxu0 %v72
    %842 = vmatprep.subr.mxu0 0.0
    %843 = vmatpush1.msra.mxu0 %v73
    %844 = vmatprep.subr.mxu0 0.0
    %845 = vmatpush1.msra.mxu0 0.0
    %846 = vmatprep.subr.mxu0 0.0
    %847 = vmatpush1.msra.mxu0 0.0
    %848 = vmatprep.subr.mxu0 0.0
    %849 = vmatpush1.msra.mxu0 0.0
    %850 = vmatprep.subr.mxu0 0.0
    %851 = vmatpush1.msra.mxu0 0.0
    %852 = vmatprep.subr.mxu0 0.0
    %853 = vmatpush1.msra.mxu0 0.0
    %854 = vmatprep.subr.mxu0 0.0
    %855 = vmatpush1.msra.mxu0 0.0
    %856 = vmatprep.subr.mxu0 0.0
    %857 = vmatpush1.msra.mxu0 0.0
    %858 = vmatprep.subr.mxu0 0.0
    %859 = vmatpush1.msra.mxu0 0.0
    %860 = vmatprep.subr.mxu0 0.0
    %861 = vmatpush1.msra.mxu0 0.0
    %862 = vmatprep.subr.mxu0 0.0
    %863 = vmatpush1.msra.mxu0 0.0
    %864 = vmatprep.subr.mxu0 0.0
    %865 = vmatpush1.msra.mxu0 0.0
    %866 = vmatprep.subr.mxu0 0.0
    %867 = vmatpush1.msra.mxu0 0.0
    %868 = vmatprep.subr.mxu0 0.0
    %869 = vmatpush1.msra.mxu0 0.0
    %870 = vmatprep.subr.mxu0 0.0
    %871 = vmatpush1.msra.mxu0 0.0
    %872 = vmatprep.subr.mxu0 0.0
    %873 = vmatpush1.msra.mxu0 0.0
    %874 = vmatprep.subr.mxu0 0.0
    %875 = vmatpush1.msra.mxu0 0.0
    %876 = vmatprep.subr.mxu0 0.0
    %877 = vmatpush1.msra.mxu0 0.0
    %878 = vmatprep.subr.mxu0 0.0
    %879 = vmatpush1.msra.mxu0 0.0
    %880 = vmatprep.subr.mxu0 0.0
    %881 = vmatpush1.msra.mxu0 0.0
    %882 = vmatprep.subr.mxu0 0.0
    %883 = vmatpush1.msra.mxu0 0.0
    %884 = vmatprep.subr.mxu0 0.0
    %885 = vmatpush1.msra.mxu0 0.0
    %886 = vmatprep.subr.mxu0 0.0
    %887 = vmatpush1.msra.mxu0 0.0
    %888 = vmatprep.subr.mxu0 0.0
    %889 = vmatpush1.msra.mxu0 0.0
    %890 = vmatprep.subr.mxu0 0.0
    %891 = vmatpush1.msra.mxu0 0.0
    %892 = vmatprep.subr.mxu0 0.0
    %893 = vmatpush1.msra.mxu0 0.0
    %894 = vmatprep.subr.mxu0 0.0
    %895 = vmatpush1.msra.mxu0 0.0
    %896 = vmatprep.subr.mxu0 0.0
    %897 = vmatpush1.msra.mxu0 0.0
    %898 = vmatprep.subr.mxu0 0.0
    %899 = vmatpush1.msra.mxu0 0.0
    %900 = vmatprep.mubr.f32.mxu0 0.0
    %901 = vmatmul.mubr.f32.gmra.mrb[0].mxu0 %v834
    %v902 = vpop.f32.mrb[0].mxu0
    %v903 = vadd.f32 0.0, %v902
    %v904 = vpop.f32.mrb[0].mxu0
    %905 = vdwg.mxu0
    %v907 = vrot.slane %v903, 2
    %v909 = vadd.f32 %v171, %v907
    %v910 = vxor.u32 %v909, 2147483648
    %v911 = vmul.f32 %v910, 1.442695
    %v912 = vpow.pop %v911
    %v913 = vadd.f32 %v912, 1.0
    %v914 = vrcp.pop %v913
    %v915 = vmul.f32 1.0, %v914
    %v916 = vtanh.pop %v909
    %v918 = vrot.slane %v713, 6
    %v920 = vmul.f32 %v915, %v918
    %922 = vrot.lane.b32.xlu0 %v916, 64
    %v923 = vpop.permute.xlu0 %922
    %v925 = vmul.f32 %v915, %v923
    %927 = vrot.lane.b32.xlu0 %v925, 32
    %v928 = vpop.permute.xlu0 %927
    %v930 = vadd.f32 %v920, %v928
    %v931 = vtanh.pop %v930
    %933 = vrot.lane.b32.xlu0 %v931, 64
    %v934 = vpop.permute.xlu0 %933
    %v936 = vmul.f32 %v915, %v934
    %v937 = vtanh.pop %v936
    %939 = vrot.lane.b32.xlu0 %v937, 32
    %v940 = vpop.permute.xlu0 %939
    %v943 = vrot.slane %v828, 2
    %944 = vrot.lane.b32.xlu0 %v943, 64
    %v945 = vpop.permute.xlu0 %944
    %v947 = vsel %vm193, %v940, %v945
    %v949 = vrot.slane %v947, 6
    %v950 = vsel %vm298, %v949, 0
    %952 = vmatprep.subr.mxu0 0.0
    %953 = vmatpush1.msra.mxu0 %v74
    %954 = vmatprep.subr.mxu0 0.0
    %955 = vmatpush1.msra.mxu0 %v75
    %956 = vmatprep.subr.mxu0 0.0
    %957 = vmatpush1.msra.mxu0 %v76
    %958 = vmatprep.subr.mxu0 0.0
    %959 = vmatpush1.msra.mxu0 %v77
    %960 = vmatprep.subr.mxu0 0.0
    %961 = vmatpush1.msra.mxu0 %v78
    %962 = vmatprep.subr.mxu0 0.0
    %963 = vmatpush1.msra.mxu0 %v79
    %964 = vmatprep.subr.mxu0 0.0
    %965 = vmatpush1.msra.mxu0 %v80
    %966 = vmatprep.subr.mxu0 0.0
    %967 = vmatpush1.msra.mxu0 %v81
    %968 = vmatprep.subr.mxu0 0.0
    %969 = vmatpush1.msra.mxu0 0.0
    %970 = vmatprep.subr.mxu0 0.0
    %971 = vmatpush1.msra.mxu0 0.0
    %972 = vmatprep.subr.mxu0 0.0
    %973 = vmatpush1.msra.mxu0 0.0
    %974 = vmatprep.subr.mxu0 0.0
    %975 = vmatpush1.msra.mxu0 0.0
    %976 = vmatprep.subr.mxu0 0.0
    %977 = vmatpush1.msra.mxu0 0.0
    %978 = vmatprep.subr.mxu0 0.0
    %979 = vmatpush1.msra.mxu0 0.0
    %980 = vmatprep.subr.mxu0 0.0
    %981 = vmatpush1.msra.mxu0 0.0
    %982 = vmatprep.subr.mxu0 0.0
    %983 = vmatpush1.msra.mxu0 0.0
    %984 = vmatprep.subr.mxu0 0.0
    %985 = vmatpush1.msra.mxu0 0.0
    %986 = vmatprep.subr.mxu0 0.0
    %987 = vmatpush1.msra.mxu0 0.0
    %988 = vmatprep.subr.mxu0 0.0
    %989 = vmatpush1.msra.mxu0 0.0
    %990 = vmatprep.subr.mxu0 0.0
    %991 = vmatpush1.msra.mxu0 0.0
    %992 = vmatprep.subr.mxu0 0.0
    %993 = vmatpush1.msra.mxu0 0.0
    %994 = vmatprep.subr.mxu0 0.0
    %995 = vmatpush1.msra.mxu0 0.0
    %996 = vmatprep.subr.mxu0 0.0
    %997 = vmatpush1.msra.mxu0 0.0
    %998 = vmatprep.subr.mxu0 0.0
    %999 = vmatpush1.msra.mxu0 0.0
    %1000 = vmatprep.subr.mxu0 0.0
    %1001 = vmatpush1.msra.mxu0 0.0
    %1002 = vmatprep.subr.mxu0 0.0
    %1003 = vmatpush1.msra.mxu0 0.0
    %1004 = vmatprep.subr.mxu0 0.0
    %1005 = vmatpush1.msra.mxu0 0.0
    %1006 = vmatprep.subr.mxu0 0.0
    %1007 = vmatpush1.msra.mxu0 0.0
    %1008 = vmatprep.subr.mxu0 0.0
    %1009 = vmatpush1.msra.mxu0 0.0
    %1010 = vmatprep.subr.mxu0 0.0
    %1011 = vmatpush1.msra.mxu0 0.0
    %1012 = vmatprep.subr.mxu0 0.0
    %1013 = vmatpush1.msra.mxu0 0.0
    %1014 = vmatprep.subr.mxu0 0.0
    %1015 = vmatpush1.msra.mxu0 0.0
    %1016 = vmatprep.mubr.f32.mxu0 0.0
    %1017 = vmatmul.mubr.f32.gmra.mrb[0].mxu0 %v950
    %v1018 = vpop.f32.mrb[0].mxu0
    %v1019 = vadd.f32 %v184, %v1018
    %v1020 = vpop.f32.mrb[0].mxu0
    %1021 = vdwg.mxu0
    %v1022 = vxor.u32 %v1019, 2147483648
    %v1023 = vmul.f32 %v1022, 1.442695
    %v1024 = vpow.pop %v1023
    %v1025 = vadd.f32 %v1024, 1.0
    %v1026 = vrcp.pop %v1025
    %v1027 = vmul.f32 1.0, %v1026
    %v1028 = vtanh.pop %v1019
    %v1029 = vmul.f32 %v1027, %v822
    %1031 = vrot.lane.b32.xlu0 %v1028, 64
    %v1032 = vpop.permute.xlu0 %1031
    %v1034 = vmul.f32 %v1027, %v1032
    %1036 = vrot.lane.b32.xlu0 %v1034, 32
    %v1037 = vpop.permute.xlu0 %1036
    %v1039 = vadd.f32 %v1029, %v1037
    %v1040 = vtanh.pop %v1039
    %1042 = vrot.lane.b32.xlu0 %v1040, 64
    %v1043 = vpop.permute.xlu0 %1042
    %v1045 = vmul.f32 %v1027, %v1043
    %v1046 = vtanh.pop %v1045
    %v1048 = vrot.slane %v936, 6
    %1049 = vrot.lane.b32.xlu0 %v1048, 32
    %v1050 = vpop.permute.xlu0 %1049
    %v1051 = vsel %vm193, %v1050, 0
    %1053 = vmatprep.subr.mxu0 0.0
    %1054 = vmatpush1.msra.mxu0 %v70
    %1055 = vmatprep.subr.mxu0 0.0
    %1056 = vmatpush1.msra.mxu0 %v71
    %1057 = vmatprep.subr.mxu0 0.0
    %1058 = vmatpush1.msra.mxu0 %v72
    %1059 = vmatprep.subr.mxu0 0.0
    %1060 = vmatpush1.msra.mxu0 %v73
    %1061 = vmatprep.subr.mxu0 0.0
    %1062 = vmatpush1.msra.mxu0 0.0
    %1063 = vmatprep.subr.mxu0 0.0
    %1064 = vmatpush1.msra.mxu0 0.0
    %1065 = vmatprep.subr.mxu0 0.0
    %1066 = vmatpush1.msra.mxu0 0.0
    %1067 = vmatprep.subr.mxu0 0.0
    %1068 = vmatpush1.msra.mxu0 0.0
    %1069 = vmatprep.subr.mxu0 0.0
    %1070 = vmatpush1.msra.mxu0 0.0
    %1071 = vmatprep.subr.mxu0 0.0
    %1072 = vmatpush1.msra.mxu0 0.0
    %1073 = vmatprep.subr.mxu0 0.0
    %1074 = vmatpush1.msra.mxu0 0.0
    %1075 = vmatprep.subr.mxu0 0.0
    %1076 = vmatpush1.msra.mxu0 0.0
    %1077 = vmatprep.subr.mxu0 0.0
    %1078 = vmatpush1.msra.mxu0 0.0
    %1079 = vmatprep.subr.mxu0 0.0
    %1080 = vmatpush1.msra.mxu0 0.0
    %1081 = vmatprep.subr.mxu0 0.0
    %1082 = vmatpush1.msra.mxu0 0.0
    %1083 = vmatprep.subr.mxu0 0.0
    %1084 = vmatpush1.msra.mxu0 0.0
    %1085 = vmatprep.subr.mxu0 0.0
    %1086 = vmatpush1.msra.mxu0 0.0
    %1087 = vmatprep.subr.mxu0 0.0
    %1088 = vmatpush1.msra.mxu0 0.0
    %1089 = vmatprep.subr.mxu0 0.0
    %1090 = vmatpush1.msra.mxu0 0.0
    %1091 = vmatprep.subr.mxu0 0.0
    %1092 = vmatpush1.msra.mxu0 0.0
    %1093 = vmatprep.subr.mxu0 0.0
    %1094 = vmatpush1.msra.mxu0 0.0
    %1095 = vmatprep.subr.mxu0 0.0
    %1096 = vmatpush1.msra.mxu0 0.0
    %1097 = vmatprep.subr.mxu0 0.0
    %1098 = vmatpush1.msra.mxu0 0.0
    %1099 = vmatprep.subr.mxu0 0.0
    %1100 = vmatpush1.msra.mxu0 0.0
    %1101 = vmatprep.subr.mxu0 0.0
    %1102 = vmatpush1.msra.mxu0 0.0
    %1103 = vmatprep.subr.mxu0 0.0
    %1104 = vmatpush1.msra.mxu0 0.0
    %1105 = vmatprep.subr.mxu0 0.0
    %1106 = vmatpush1.msra.mxu0 0.0
    %1107 = vmatprep.subr.mxu0 0.0
    %1108 = vmatpush1.msra.mxu0 0.0
    %1109 = vmatprep.subr.mxu0 0.0
    %1110 = vmatpush1.msra.mxu0 0.0
    %1111 = vmatprep.subr.mxu0 0.0
    %1112 = vmatpush1.msra.mxu0 0.0
    %1113 = vmatprep.subr.mxu0 0.0
    %1114 = vmatpush1.msra.mxu0 0.0
    %1115 = vmatprep.subr.mxu0 0.0
    %1116 = vmatpush1.msra.mxu0 0.0
    %1117 = vmatprep.mubr.f32.mxu0 0.0
    %1118 = vmatmul.mubr.f32.gmra.mrb[0].mxu0 %v1051
    %v1119 = vpop.f32.mrb[0].mxu0
    %v1120 = vadd.f32 0.0, %v1119
    %v1121 = vpop.f32.mrb[0].mxu0
    %1122 = vdwg.mxu0
    %v1123 = vadd.f32 %v176, %v1120
    %v1124 = vxor.u32 %v1123, 2147483648
    %v1125 = vmul.f32 %v1124, 1.442695
    %v1126 = vpow.pop %v1125
    %v1127 = vadd.f32 %v1126, 1.0
    %v1128 = vrcp.pop %v1127
    %v1129 = vmul.f32 1.0, %v1128
    %v1130 = vtanh.pop %v1123
    %v1132 = vrot.slane %v930, 6
    %v1134 = vmul.f32 %v1129, %v1132
    %1136 = vrot.lane.b32.xlu0 %v1130, 64
    %v1137 = vpop.permute.xlu0 %1136
    %v1139 = vmul.f32 %v1129, %v1137
    %1141 = vrot.lane.b32.xlu0 %v1139, 32
    %v1142 = vpop.permute.xlu0 %1141
    %v1144 = vadd.f32 %v1134, %v1142
    %v1145 = vtanh.pop %v1144
    %1147 = vrot.lane.b32.xlu0 %v1145, 64
    %v1148 = vpop.permute.xlu0 %1147
    %v1150 = vmul.f32 %v1129, %v1148
    %v1151 = vtanh.pop %v1150
    %1153 = vrot.lane.b32.xlu0 %v1151, 32
    %v1154 = vpop.permute.xlu0 %1153
    %1157 = vrot.lane.b32.xlu0 %v1045, 64
    %v1158 = vpop.permute.xlu0 %1157
    %v1160 = vsel %vm193, %v1154, %v1158
    %v1162 = vsel %vm298, %v1160, 0
    %1164 = vmatprep.subr.mxu0 0.0
    %1165 = vmatpush1.msra.mxu0 %v74
    %1166 = vmatprep.subr.mxu0 0.0
    %1167 = vmatpush1.msra.mxu0 %v75
    %1168 = vmatprep.subr.mxu0 0.0
    %1169 = vmatpush1.msra.mxu0 %v76
    %1170 = vmatprep.subr.mxu0 0.0
    %1171 = vmatpush1.msra.mxu0 %v77
    %1172 = vmatprep.subr.mxu0 0.0
    %1173 = vmatpush1.msra.mxu0 %v78
    %1174 = vmatprep.subr.mxu0 0.0
    %1175 = vmatpush1.msra.mxu0 %v79
    %1176 = vmatprep.subr.mxu0 0.0
    %1177 = vmatpush1.msra.mxu0 %v80
    %1178 = vmatprep.subr.mxu0 0.0
    %1179 = vmatpush1.msra.mxu0 %v81
    %1180 = vmatprep.subr.mxu0 0.0
    %1181 = vmatpush1.msra.mxu0 0.0
    %1182 = vmatprep.subr.mxu0 0.0
    %1183 = vmatpush1.msra.mxu0 0.0
    %1184 = vmatprep.subr.mxu0 0.0
    %1185 = vmatpush1.msra.mxu0 0.0
    %1186 = vmatprep.subr.mxu0 0.0
    %1187 = vmatpush1.msra.mxu0 0.0
    %1188 = vmatprep.subr.mxu0 0.0
    %1189 = vmatpush1.msra.mxu0 0.0
    %1190 = vmatprep.subr.mxu0 0.0
    %1191 = vmatpush1.msra.mxu0 0.0
    %1192 = vmatprep.subr.mxu0 0.0
    %1193 = vmatpush1.msra.mxu0 0.0
    %1194 = vmatprep.subr.mxu0 0.0
    %1195 = vmatpush1.msra.mxu0 0.0
    %1196 = vmatprep.subr.mxu0 0.0
    %1197 = vmatpush1.msra.mxu0 0.0
    %1198 = vmatprep.subr.mxu0 0.0
    %1199 = vmatpush1.msra.mxu0 0.0
    %1200 = vmatprep.subr.mxu0 0.0
    %1201 = vmatpush1.msra.mxu0 0.0
    %1202 = vmatprep.subr.mxu0 0.0
    %1203 = vmatpush1.msra.mxu0 0.0
    %1204 = vmatprep.subr.mxu0 0.0
    %1205 = vmatpush1.msra.mxu0 0.0
    %1206 = vmatprep.subr.mxu0 0.0
    %1207 = vmatpush1.msra.mxu0 0.0
    %1208 = vmatprep.subr.mxu0 0.0
    %1209 = vmatpush1.msra.mxu0 0.0
    %1210 = vmatprep.subr.mxu0 0.0
    %1211 = vmatpush1.msra.mxu0 0.0
    %1212 = vmatprep.subr.mxu0 0.0
    %1213 = vmatpush1.msra.mxu0 0.0
    %1214 = vmatprep.subr.mxu0 0.0
    %1215 = vmatpush1.msra.mxu0 0.0
    %1216 = vmatprep.subr.mxu0 0.0
    %1217 = vmatpush1.msra.mxu0 0.0
    %1218 = vmatprep.subr.mxu0 0.0
    %1219 = vmatpush1.msra.mxu0 0.0
    %1220 = vmatprep.subr.mxu0 0.0
    %1221 = vmatpush1.msra.mxu0 0.0
    %1222 = vmatprep.subr.mxu0 0.0
    %1223 = vmatpush1.msra.mxu0 0.0
    %1224 = vmatprep.subr.mxu0 0.0
    %1225 = vmatpush1.msra.mxu0 0.0
    %1226 = vmatprep.subr.mxu0 0.0
    %1227 = vmatpush1.msra.mxu0 0.0
    %1228 = vmatprep.mubr.f32.mxu0 0.0
    %1229 = vmatmul.mubr.f32.gmra.mrb[0].mxu0 %v1162
    %v1230 = vpop.f32.mrb[0].mxu0
    %v1231 = vadd.f32 %v184, %v1230
    %v1232 = vpop.f32.mrb[0].mxu0
    %1233 = vdwg.mxu0
    %v1234 = vxor.u32 %v1231, 2147483648
    %v1235 = vmul.f32 %v1234, 1.442695
    %v1236 = vpow.pop %v1235
    %v1237 = vadd.f32 %v1236, 1.0
    %v1238 = vrcp.pop %v1237
    %v1239 = vmul.f32 1.0, %v1238
    %v1240 = vtanh.pop %v1231
    %v1241 = vmul.f32 %v1239, %v1039
    %1243 = vrot.lane.b32.xlu0 %v1240, 64
    %v1244 = vpop.permute.xlu0 %1243
    %v1246 = vmul.f32 %v1239, %v1244
    %1248 = vrot.lane.b32.xlu0 %v1246, 32
    %v1249 = vpop.permute.xlu0 %1248
    %v1251 = vadd.f32 %v1241, %v1249
    %v1252 = vtanh.pop %v1251
    %1254 = vrot.lane.b32.xlu0 %v1252, 64
    %v1255 = vpop.permute.xlu0 %1254
    %v1257 = vmul.f32 %v1239, %v1255
    %v1258 = vtanh.pop %v1257
    %1260 = vrot.lane.b32.xlu0 %v1150, 32
    %v1261 = vpop.permute.xlu0 %1260
    %v1262 = vsel %vm193, %v1261, 0
    %1264 = vmatprep.subr.mxu0 0.0
    %1265 = vmatpush1.msra.mxu0 %v70
    %1266 = vmatprep.subr.mxu0 0.0
    %1267 = vmatpush1.msra.mxu0 %v71
    %1268 = vmatprep.subr.mxu0 0.0
    %1269 = vmatpush1.msra.mxu0 %v72
    %1270 = vmatprep.subr.mxu0 0.0
    %1271 = vmatpush1.msra.mxu0 %v73
    %1272 = vmatprep.subr.mxu0 0.0
    %1273 = vmatpush1.msra.mxu0 0.0
    %1274 = vmatprep.subr.mxu0 0.0
    %1275 = vmatpush1.msra.mxu0 0.0
    %1276 = vmatprep.subr.mxu0 0.0
    %1277 = vmatpush1.msra.mxu0 0.0
    %1278 = vmatprep.subr.mxu0 0.0
    %1279 = vmatpush1.msra.mxu0 0.0
    %1280 = vmatprep.subr.mxu0 0.0
    %1281 = vmatpush1.msra.mxu0 0.0
    %1282 = vmatprep.subr.mxu0 0.0
    %1283 = vmatpush1.msra.mxu0 0.0
    %1284 = vmatprep.subr.mxu0 0.0
    %1285 = vmatpush1.msra.mxu0 0.0
    %1286 = vmatprep.subr.mxu0 0.0
    %1287 = vmatpush1.msra.mxu0 0.0
    %1288 = vmatprep.subr.mxu0 0.0
    %1289 = vmatpush1.msra.mxu0 0.0
    %1290 = vmatprep.subr.mxu0 0.0
    %1291 = vmatpush1.msra.mxu0 0.0
    %1292 = vmatprep.subr.mxu0 0.0
    %1293 = vmatpush1.msra.mxu0 0.0
    %1294 = vmatprep.subr.mxu0 0.0
    %1295 = vmatpush1.msra.mxu0 0.0
    %1296 = vmatprep.subr.mxu0 0.0
    %1297 = vmatpush1.msra.mxu0 0.0
    %1298 = vmatprep.subr.mxu0 0.0
    %1299 = vmatpush1.msra.mxu0 0.0
    %1300 = vmatprep.subr.mxu0 0.0
    %1301 = vmatpush1.msra.mxu0 0.0
    %1302 = vmatprep.subr.mxu0 0.0
    %1303 = vmatpush1.msra.mxu0 0.0
    %1304 = vmatprep.subr.mxu0 0.0
    %1305 = vmatpush1.msra.mxu0 0.0
    %1306 = vmatprep.subr.mxu0 0.0
    %1307 = vmatpush1.msra.mxu0 0.0
    %1308 = vmatprep.subr.mxu0 0.0
    %1309 = vmatpush1.msra.mxu0 0.0
    %1310 = vmatprep.subr.mxu0 0.0
    %1311 = vmatpush1.msra.mxu0 0.0
    %1312 = vmatprep.subr.mxu0 0.0
    %1313 = vmatpush1.msra.mxu0 0.0
    %1314 = vmatprep.subr.mxu0 0.0
    %1315 = vmatpush1.msra.mxu0 0.0
    %1316 = vmatprep.subr.mxu0 0.0
    %1317 = vmatpush1.msra.mxu0 0.0
    %1318 = vmatprep.subr.mxu0 0.0
    %1319 = vmatpush1.msra.mxu0 0.0
    %1320 = vmatprep.subr.mxu0 0.0
    %1321 = vmatpush1.msra.mxu0 0.0
    %1322 = vmatprep.subr.mxu0 0.0
    %1323 = vmatpush1.msra.mxu0 0.0
    %1324 = vmatprep.subr.mxu0 0.0
    %1325 = vmatpush1.msra.mxu0 0.0
    %1326 = vmatprep.subr.mxu0 0.0
    %1327 = vmatpush1.msra.mxu0 0.0
    %1328 = vmatprep.mubr.f32.mxu0 0.0
    %1329 = vmatmul.mubr.f32.gmra.mrb[0].mxu0 %v1262
    %v1330 = vpop.f32.mrb[0].mxu0
    %v1331 = vadd.f32 0.0, %v1330
    %v1332 = vpop.f32.mrb[0].mxu0
    %1333 = vdwg.mxu0
    %v1335 = vrot.slane %v1331, 6
    %v1337 = vadd.f32 %v176, %v1335
    %v1338 = vxor.u32 %v1337, 2147483648
    %v1339 = vmul.f32 %v1338, 1.442695
    %v1340 = vpow.pop %v1339
    %v1341 = vadd.f32 %v1340, 1.0
    %v1342 = vrcp.pop %v1341
    %v1343 = vmul.f32 1.0, %v1342
    %v1344 = vtanh.pop %v1337
    %v1346 = vrot.slane %v1144, 6
    %v1348 = vmul.f32 %v1343, %v1346
    %1350 = vrot.lane.b32.xlu0 %v1344, 64
    %v1351 = vpop.permute.xlu0 %1350
    %v1353 = vmul.f32 %v1343, %v1351
    %1355 = vrot.lane.b32.xlu0 %v1353, 32
    %v1356 = vpop.permute.xlu0 %1355
    %v1358 = vadd.f32 %v1348, %v1356
    %v1359 = vtanh.pop %v1358
    %1361 = vrot.lane.b32.xlu0 %v1359, 64
    %v1362 = vpop.permute.xlu0 %1361
    %v1364 = vmul.f32 %v1343, %v1362
    %v1365 = vtanh.pop %v1364
    %1367 = vrot.lane.b32.xlu0 %v1365, 32
    %v1368 = vpop.permute.xlu0 %1367
    %v1371 = vrot.slane %v1257, 6
    %1372 = vrot.lane.b32.xlu0 %v1371, 64
    %v1373 = vpop.permute.xlu0 %1372
    %v1375 = vsel %vm193, %v1368, %v1373
    %v1377 = vrot.slane %v1375, 2
    %v1378 = vsel %vm298, %v1377, 0
    %1380 = vmatprep.subr.mxu0 0.0
    %1381 = vmatpush1.msra.mxu0 %v74
    %1382 = vmatprep.subr.mxu0 0.0
    %1383 = vmatpush1.msra.mxu0 %v75
    %1384 = vmatprep.subr.mxu0 0.0
    %1385 = vmatpush1.msra.mxu0 %v76
    %1386 = vmatprep.subr.mxu0 0.0
    %1387 = vmatpush1.msra.mxu0 %v77
    %1388 = vmatprep.subr.mxu0 0.0
    %1389 = vmatpush1.msra.mxu0 %v78
    %1390 = vmatprep.subr.mxu0 0.0
    %1391 = vmatpush1.msra.mxu0 %v79
    %1392 = vmatprep.subr.mxu0 0.0
    %1393 = vmatpush1.msra.mxu0 %v80
    %1394 = vmatprep.subr.mxu0 0.0
    %1395 = vmatpush1.msra.mxu0 %v81
    %1396 = vmatprep.subr.mxu0 0.0
    %1397 = vmatpush1.msra.mxu0 0.0
    %1398 = vmatprep.subr.mxu0 0.0
    %1399 = vmatpush1.msra.mxu0 0.0
    %1400 = vmatprep.subr.mxu0 0.0
    %1401 = vmatpush1.msra.mxu0 0.0
    %1402 = vmatprep.subr.mxu0 0.0
    %1403 = vmatpush1.msra.mxu0 0.0
    %1404 = vmatprep.subr.mxu0 0.0
    %1405 = vmatpush1.msra.mxu0 0.0
    %1406 = vmatprep.subr.mxu0 0.0
    %1407 = vmatpush1.msra.mxu0 0.0
    %1408 = vmatprep.subr.mxu0 0.0
    %1409 = vmatpush1.msra.mxu0 0.0
    %1410 = vmatprep.subr.mxu0 0.0
    %1411 = vmatpush1.msra.mxu0 0.0
    %1412 = vmatprep.subr.mxu0 0.0
    %1413 = vmatpush1.msra.mxu0 0.0
    %1414 = vmatprep.subr.mxu0 0.0
    %1415 = vmatpush1.msra.mxu0 0.0
    %1416 = vmatprep.subr.mxu0 0.0
    %1417 = vmatpush1.msra.mxu0 0.0
    %1418 = vmatprep.subr.mxu0 0.0
    %1419 = vmatpush1.msra.mxu0 0.0
    %1420 = vmatprep.subr.mxu0 0.0
    %1421 = vmatpush1.msra.mxu0 0.0
    %1422 = vmatprep.subr.mxu0 0.0
    %1423 = vmatpush1.msra.mxu0 0.0
    %1424 = vmatprep.subr.mxu0 0.0
    %1425 = vmatpush1.msra.mxu0 0.0
    %1426 = vmatprep.subr.mxu0 0.0
    %1427 = vmatpush1.msra.mxu0 0.0
    %1428 = vmatprep.subr.mxu0 0.0
    %1429 = vmatpush1.msra.mxu0 0.0
    %1430 = vmatprep.subr.mxu0 0.0
    %1431 = vmatpush1.msra.mxu0 0.0
    %1432 = vmatprep.subr.mxu0 0.0
    %1433 = vmatpush1.msra.mxu0 0.0
    %1434 = vmatprep.subr.mxu0 0.0
    %1435 = vmatpush1.msra.mxu0 0.0
    %1436 = vmatprep.subr.mxu0 0.0
    %1437 = vmatpush1.msra.mxu0 0.0
    %1438 = vmatprep.subr.mxu0 0.0
    %1439 = vmatpush1.msra.mxu0 0.0
    %1440 = vmatprep.subr.mxu0 0.0
    %1441 = vmatpush1.msra.mxu0 0.0
    %1442 = vmatprep.subr.mxu0 0.0
    %1443 = vmatpush1.msra.mxu0 0.0
    %1444 = vmatprep.mubr.f32.mxu0 0.0
    %1445 = vmatmul.mubr.f32.gmra.mrb[0].mxu0 %v1378
    %v1446 = vpop.f32.mrb[0].mxu0
    %v1447 = vadd.f32 %v184, %v1446
    %v1448 = vpop.f32.mrb[0].mxu0
    %1449 = vdwg.mxu0
    %v1450 = vxor.u32 %v1447, 2147483648
    %v1451 = vmul.f32 %v1450, 1.442695
    %v1452 = vpow.pop %v1451
    %v1453 = vadd.f32 %v1452, 1.0
    %v1454 = vrcp.pop %v1453
    %v1455 = vmul.f32 1.0, %v1454
    %v1456 = vtanh.pop %v1447
    %v1457 = vmul.f32 %v1455, %v1251
    %1459 = vrot.lane.b32.xlu0 %v1456, 64
    %v1460 = vpop.permute.xlu0 %1459
    %v1462 = vmul.f32 %v1455, %v1460
    %1464 = vrot.lane.b32.xlu0 %v1462, 32
    %v1465 = vpop.permute.xlu0 %1464
    %v1467 = vadd.f32 %v1457, %v1465
    %v1468 = vtanh.pop %v1467
    %1470 = vrot.lane.b32.xlu0 %v1468, 64
    %v1471 = vpop.permute.xlu0 %1470
    %v1473 = vmul.f32 %v1455, %v1471
    %v1474 = vtanh.pop %v1473
    %v1476 = vrot.slane %v1364, 2
    %1477 = vrot.lane.b32.xlu0 %v1476, 32
    %v1478 = vpop.permute.xlu0 %1477
    %v1479 = vsel %vm193, %v1478, 0
    %1481 = vmatprep.subr.mxu0 0.0
    %1482 = vmatpush1.msra.mxu0 %v70
    %1483 = vmatprep.subr.mxu0 0.0
    %1484 = vmatpush1.msra.mxu0 %v71
    %1485 = vmatprep.subr.mxu0 0.0
    %1486 = vmatpush1.msra.mxu0 %v72
    %1487 = vmatprep.subr.mxu0 0.0
    %1488 = vmatpush1.msra.mxu0 %v73
    %1489 = vmatprep.subr.mxu0 0.0
    %1490 = vmatpush1.msra.mxu0 0.0
    %1491 = vmatprep.subr.mxu0 0.0
    %1492 = vmatpush1.msra.mxu0 0.0
    %1493 = vmatprep.subr.mxu0 0.0
    %1494 = vmatpush1.msra.mxu0 0.0
    %1495 = vmatprep.subr.mxu0 0.0
    %1496 = vmatpush1.msra.mxu0 0.0
    %1497 = vmatprep.subr.mxu0 0.0
    %1498 = vmatpush1.msra.mxu0 0.0
    %1499 = vmatprep.subr.mxu0 0.0
    %1500 = vmatpush1.msra.mxu0 0.0
    %1501 = vmatprep.subr.mxu0 0.0
    %1502 = vmatpush1.msra.mxu0 0.0
    %1503 = vmatprep.subr.mxu0 0.0
    %1504 = vmatpush1.msra.mxu0 0.0
    %1505 = vmatprep.subr.mxu0 0.0
    %1506 = vmatpush1.msra.mxu0 0.0
    %1507 = vmatprep.subr.mxu0 0.0
    %1508 = vmatpush1.msra.mxu0 0.0
    %1509 = vmatprep.subr.mxu0 0.0
    %1510 = vmatpush1.msra.mxu0 0.0
    %1511 = vmatprep.subr.mxu0 0.0
    %1512 = vmatpush1.msra.mxu0 0.0
    %1513 = vmatprep.subr.mxu0 0.0
    %1514 = vmatpush1.msra.mxu0 0.0
    %1515 = vmatprep.subr.mxu0 0.0
    %1516 = vmatpush1.msra.mxu0 0.0
    %1517 = vmatprep.subr.mxu0 0.0
    %1518 = vmatpush1.msra.mxu0 0.0
    %1519 = vmatprep.subr.mxu0 0.0
    %1520 = vmatpush1.msra.mxu0 0.0
    %1521 = vmatprep.subr.mxu0 0.0
    %1522 = vmatpush1.msra.mxu0 0.0
    %1523 = vmatprep.subr.mxu0 0.0
    %1524 = vmatpush1.msra.mxu0 0.0
    %1525 = vmatprep.subr.mxu0 0.0
    %1526 = vmatpush1.msra.mxu0 0.0
    %1527 = vmatprep.subr.mxu0 0.0
    %1528 = vmatpush1.msra.mxu0 0.0
    %1529 = vmatprep.subr.mxu0 0.0
    %1530 = vmatpush1.msra.mxu0 0.0
    %1531 = vmatprep.subr.mxu0 0.0
    %1532 = vmatpush1.msra.mxu0 0.0
    %1533 = vmatprep.subr.mxu0 0.0
    %1534 = vmatpush1.msra.mxu0 0.0
    %1535 = vmatprep.subr.mxu0 0.0
    %1536 = vmatpush1.msra.mxu0 0.0
    %1537 = vmatprep.subr.mxu0 0.0
    %1538 = vmatpush1.msra.mxu0 0.0
    %1539 = vmatprep.subr.mxu0 0.0
    %1540 = vmatpush1.msra.mxu0 0.0
    %1541 = vmatprep.subr.mxu0 0.0
    %1542 = vmatpush1.msra.mxu0 0.0
    %1543 = vmatprep.subr.mxu0 0.0
    %1544 = vmatpush1.msra.mxu0 0.0
    %1545 = vmatprep.mubr.f32.mxu0 0.0
    %1546 = vmatmul.mubr.f32.gmra.mrb[0].mxu0 %v1479
    %v1547 = vpop.f32.mrb[0].mxu0
    %v1548 = vadd.f32 0.0, %v1547
    %v1549 = vpop.f32.mrb[0].mxu0
    %1550 = vdwg.mxu0
    %v1552 = vrot.slane %v1548, 4
    %v1554 = vadd.f32 %v176, %v1552
    %v1555 = vxor.u32 %v1554, 2147483648
    %v1556 = vmul.f32 %v1555, 1.442695
    %v1557 = vpow.pop %v1556
    %v1558 = vadd.f32 %v1557, 1.0
    %v1559 = vrcp.pop %v1558
    %v1560 = vmul.f32 1.0, %v1559
    %v1561 = vtanh.pop %v1554
    %v1563 = vrot.slane %v1358, 6
    %v1565 = vmul.f32 %v1560, %v1563
    %1567 = vrot.lane.b32.xlu0 %v1561, 64
    %v1568 = vpop.permute.xlu0 %1567
    %v1570 = vmul.f32 %v1560, %v1568
    %1572 = vrot.lane.b32.xlu0 %v1570, 32
    %v1573 = vpop.permute.xlu0 %1572
    %v1575 = vadd.f32 %v1565, %v1573
    %v1576 = vtanh.pop %v1575
    %1578 = vrot.lane.b32.xlu0 %v1576, 64
    %v1579 = vpop.permute.xlu0 %1578
    %v1581 = vmul.f32 %v1560, %v1579
    %v1582 = vtanh.pop %v1581
    %1584 = vrot.lane.b32.xlu0 %v1582, 32
    %v1585 = vpop.permute.xlu0 %1584
    %v1588 = vrot.slane %v1473, 4
    %1589 = vrot.lane.b32.xlu0 %v1588, 64
    %v1590 = vpop.permute.xlu0 %1589
    %v1592 = vsel %vm193, %v1585, %v1590
    %v1594 = vrot.slane %v1592, 4
    %v1595 = vsel %vm298, %v1594, 0
    %1597 = vmatprep.subr.mxu0 0.0
    %1598 = vmatpush1.msra.mxu0 %v74
    %1599 = vmatprep.subr.mxu0 0.0
    %1600 = vmatpush1.msra.mxu0 %v75
    %1601 = vmatprep.subr.mxu0 0.0
    %1602 = vmatpush1.msra.mxu0 %v76
    %1603 = vmatprep.subr.mxu0 0.0
    %1604 = vmatpush1.msra.mxu0 %v77
    %1605 = vmatprep.subr.mxu0 0.0
    %1606 = vmatpush1.msra.mxu0 %v78
    %1607 = vmatprep.subr.mxu0 0.0
    %1608 = vmatpush1.msra.mxu0 %v79
    %1609 = vmatprep.subr.mxu0 0.0
    %1610 = vmatpush1.msra.mxu0 %v80
    %1611 = vmatprep.subr.mxu0 0.0
    %1612 = vmatpush1.msra.mxu0 %v81
    %1613 = vmatprep.subr.mxu0 0.0
    %1614 = vmatpush1.msra.mxu0 0.0
    %1615 = vmatprep.subr.mxu0 0.0
    %1616 = vmatpush1.msra.mxu0 0.0
    %1617 = vmatprep.subr.mxu0 0.0
    %1618 = vmatpush1.msra.mxu0 0.0
    %1619 = vmatprep.subr.mxu0 0.0
    %1620 = vmatpush1.msra.mxu0 0.0
    %1621 = vmatprep.subr.mxu0 0.0
    %1622 = vmatpush1.msra.mxu0 0.0
    %1623 = vmatprep.subr.mxu0 0.0
    %1624 = vmatpush1.msra.mxu0 0.0
    %1625 = vmatprep.subr.mxu0 0.0
    %1626 = vmatpush1.msra.mxu0 0.0
    %1627 = vmatprep.subr.mxu0 0.0
    %1628 = vmatpush1.msra.mxu0 0.0
    %1629 = vmatprep.subr.mxu0 0.0
    %1630 = vmatpush1.msra.mxu0 0.0
    %1631 = vmatprep.subr.mxu0 0.0
    %1632 = vmatpush1.msra.mxu0 0.0
    %1633 = vmatprep.subr.mxu0 0.0
    %1634 = vmatpush1.msra.mxu0 0.0
    %1635 = vmatprep.subr.mxu0 0.0
    %1636 = vmatpush1.msra.mxu0 0.0
    %1637 = vmatprep.subr.mxu0 0.0
    %1638 = vmatpush1.msra.mxu0 0.0
    %1639 = vmatprep.subr.mxu0 0.0
    %1640 = vmatpush1.msra.mxu0 0.0
    %1641 = vmatprep.subr.mxu0 0.0
    %1642 = vmatpush1.msra.mxu0 0.0
    %1643 = vmatprep.subr.mxu0 0.0
    %1644 = vmatpush1.msra.mxu0 0.0
    %1645 = vmatprep.subr.mxu0 0.0
    %1646 = vmatpush1.msra.mxu0 0.0
    %1647 = vmatprep.subr.mxu0 0.0
    %1648 = vmatpush1.msra.mxu0 0.0
    %1649 = vmatprep.subr.mxu0 0.0
    %1650 = vmatpush1.msra.mxu0 0.0
    %1651 = vmatprep.subr.mxu0 0.0
    %1652 = vmatpush1.msra.mxu0 0.0
    %1653 = vmatprep.subr.mxu0 0.0
    %1654 = vmatpush1.msra.mxu0 0.0
    %1655 = vmatprep.subr.mxu0 0.0
    %1656 = vmatpush1.msra.mxu0 0.0
    %1657 = vmatprep.subr.mxu0 0.0
    %1658 = vmatpush1.msra.mxu0 0.0
    %1659 = vmatprep.subr.mxu0 0.0
    %1660 = vmatpush1.msra.mxu0 0.0
    %1661 = vmatprep.mubr.f32.mxu0 0.0
    %1662 = vmatmul.mubr.f32.gmra.mrb[0].mxu0 %v1595
    %v1663 = vpop.f32.mrb[0].mxu0
    %v1664 = vadd.f32 %v184, %v1663
    %v1665 = vpop.f32.mrb[0].mxu0
    %1666 = vdwg.mxu0
    %v1667 = vxor.u32 %v1664, 2147483648
    %v1668 = vmul.f32 %v1667, 1.442695
    %v1669 = vpow.pop %v1668
    %v1670 = vadd.f32 %v1669, 1.0
    %v1671 = vrcp.pop %v1670
    %v1672 = vmul.f32 1.0, %v1671
    %v1673 = vtanh.pop %v1664
    %v1674 = vmul.f32 %v1672, %v1467
    %1676 = vrot.lane.b32.xlu0 %v1673, 64
    %v1677 = vpop.permute.xlu0 %1676
    %v1679 = vmul.f32 %v1672, %v1677
    %1681 = vrot.lane.b32.xlu0 %v1679, 32
    %v1682 = vpop.permute.xlu0 %1681
    %v1684 = vadd.f32 %v1674, %v1682
    %v1685 = vtanh.pop %v1684
    %1687 = vrot.lane.b32.xlu0 %v1685, 64
    %v1688 = vpop.permute.xlu0 %1687
    %v1690 = vmul.f32 %v1672, %v1688
    %v1691 = vtanh.pop %v1690
    %v1693 = vrot.slane %v1581, 4
    %1694 = vrot.lane.b32.xlu0 %v1693, 32
    %v1695 = vpop.permute.xlu0 %1694
    %v1696 = vsel %vm193, %v1695, 0
    %1698 = vmatprep.subr.mxu0 0.0
    %1699 = vmatpush1.msra.mxu0 %v70
    %1700 = vmatprep.subr.mxu0 0.0
    %1701 = vmatpush1.msra.mxu0 %v71
    %1702 = vmatprep.subr.mxu0 0.0
    %1703 = vmatpush1.msra.mxu0 %v72
    %1704 = vmatprep.subr.mxu0 0.0
    %1705 = vmatpush1.msra.mxu0 %v73
    %1706 = vmatprep.subr.mxu0 0.0
    %1707 = vmatpush1.msra.mxu0 0.0
    %1708 = vmatprep.subr.mxu0 0.0
    %1709 = vmatpush1.msra.mxu0 0.0
    %1710 = vmatprep.subr.mxu0 0.0
    %1711 = vmatpush1.msra.mxu0 0.0
    %1712 = vmatprep.subr.mxu0 0.0
    %1713 = vmatpush1.msra.mxu0 0.0
    %1714 = vmatprep.subr.mxu0 0.0
    %1715 = vmatpush1.msra.mxu0 0.0
    %1716 = vmatprep.subr.mxu0 0.0
    %1717 = vmatpush1.msra.mxu0 0.0
    %1718 = vmatprep.subr.mxu0 0.0
    %1719 = vmatpush1.msra.mxu0 0.0
    %1720 = vmatprep.subr.mxu0 0.0
    %1721 = vmatpush1.msra.mxu0 0.0
    %1722 = vmatprep.subr.mxu0 0.0
    %1723 = vmatpush1.msra.mxu0 0.0
    %1724 = vmatprep.subr.mxu0 0.0
    %1725 = vmatpush1.msra.mxu0 0.0
    %1726 = vmatprep.subr.mxu0 0.0
    %1727 = vmatpush1.msra.mxu0 0.0
    %1728 = vmatprep.subr.mxu0 0.0
    %1729 = vmatpush1.msra.mxu0 0.0
    %1730 = vmatprep.subr.mxu0 0.0
    %1731 = vmatpush1.msra.mxu0 0.0
    %1732 = vmatprep.subr.mxu0 0.0
    %1733 = vmatpush1.msra.mxu0 0.0
    %1734 = vmatprep.subr.mxu0 0.0
    %1735 = vmatpush1.msra.mxu0 0.0
    %1736 = vmatprep.subr.mxu0 0.0
    %1737 = vmatpush1.msra.mxu0 0.0
    %1738 = vmatprep.subr.mxu0 0.0
    %1739 = vmatpush1.msra.mxu0 0.0
    %1740 = vmatprep.subr.mxu0 0.0
    %1741 = vmatpush1.msra.mxu0 0.0
    %1742 = vmatprep.subr.mxu0 0.0
    %1743 = vmatpush1.msra.mxu0 0.0
    %1744 = vmatprep.subr.mxu0 0.0
    %1745 = vmatpush1.msra.mxu0 0.0
    %1746 = vmatprep.subr.mxu0 0.0
    %1747 = vmatpush1.msra.mxu0 0.0
    %1748 = vmatprep.subr.mxu0 0.0
    %1749 = vmatpush1.msra.mxu0 0.0
    %1750 = vmatprep.subr.mxu0 0.0
    %1751 = vmatpush1.msra.mxu0 0.0
    %1752 = vmatprep.subr.mxu0 0.0
    %1753 = vmatpush1.msra.mxu0 0.0
    %1754 = vmatprep.subr.mxu0 0.0
    %1755 = vmatpush1.msra.mxu0 0.0
    %1756 = vmatprep.subr.mxu0 0.0
    %1757 = vmatpush1.msra.mxu0 0.0
    %1758 = vmatprep.subr.mxu0 0.0
    %1759 = vmatpush1.msra.mxu0 0.0
    %1760 = vmatprep.subr.mxu0 0.0
    %1761 = vmatpush1.msra.mxu0 0.0
    %1762 = vmatprep.mubr.f32.mxu0 0.0
    %1763 = vmatmul.mubr.f32.gmra.mrb[0].mxu0 %v1696
    %v1764 = vpop.f32.mrb[0].mxu0
    %v1765 = vadd.f32 0.0, %v1764
    %v1766 = vpop.f32.mrb[0].mxu0
    %1767 = vdwg.mxu0
    %v1769 = vrot.slane %v1765, 2
    %v1771 = vadd.f32 %v176, %v1769
    %v1772 = vxor.u32 %v1771, 2147483648
    %v1773 = vmul.f32 %v1772, 1.442695
    %v1774 = vpow.pop %v1773
    %v1775 = vadd.f32 %v1774, 1.0
    %v1776 = vrcp.pop %v1775
    %v1777 = vmul.f32 1.0, %v1776
    %v1778 = vtanh.pop %v1771
    %v1780 = vrot.slane %v1575, 6
    %v1782 = vmul.f32 %v1777, %v1780
    %1784 = vrot.lane.b32.xlu0 %v1778, 64
    %v1785 = vpop.permute.xlu0 %1784
    %v1787 = vmul.f32 %v1777, %v1785
    %1789 = vrot.lane.b32.xlu0 %v1787, 32
    %v1790 = vpop.permute.xlu0 %1789
    %v1792 = vadd.f32 %v1782, %v1790
    %v1793 = vtanh.pop %v1792
    %1795 = vrot.lane.b32.xlu0 %v1793, 64
    %v1796 = vpop.permute.xlu0 %1795
    %v1798 = vmul.f32 %v1777, %v1796
    %v1799 = vtanh.pop %v1798
    %1801 = vrot.lane.b32.xlu0 %v1799, 32
    %v1802 = vpop.permute.xlu0 %1801
    %v1805 = vrot.slane %v1690, 2
    %1806 = vrot.lane.b32.xlu0 %v1805, 64
    %v1807 = vpop.permute.xlu0 %1806
    %v1809 = vsel %vm193, %v1802, %v1807
    %v1811 = vrot.slane %v1809, 6
    %v1812 = vsel %vm298, %v1811, 0
    %1814 = vmatprep.subr.mxu0 0.0
    %1815 = vmatpush1.msra.mxu0 %v74
    %1816 = vmatprep.subr.mxu0 0.0
    %1817 = vmatpush1.msra.mxu0 %v75
    %1818 = vmatprep.subr.mxu0 0.0
    %1819 = vmatpush1.msra.mxu0 %v76
    %1820 = vmatprep.subr.mxu0 0.0
    %1821 = vmatpush1.msra.mxu0 %v77
    %1822 = vmatprep.subr.mxu0 0.0
    %1823 = vmatpush1.msra.mxu0 %v78
    %1824 = vmatprep.subr.mxu0 0.0
    %1825 = vmatpush1.msra.mxu0 %v79
    %1826 = vmatprep.subr.mxu0 0.0
    %1827 = vmatpush1.msra.mxu0 %v80
    %1828 = vmatprep.subr.mxu0 0.0
    %1829 = vmatpush1.msra.mxu0 %v81
    %1830 = vmatprep.subr.mxu0 0.0
    %1831 = vmatpush1.msra.mxu0 0.0
    %1832 = vmatprep.subr.mxu0 0.0
    %1833 = vmatpush1.msra.mxu0 0.0
    %1834 = vmatprep.subr.mxu0 0.0
    %1835 = vmatpush1.msra.mxu0 0.0
    %1836 = vmatprep.subr.mxu0 0.0
    %1837 = vmatpush1.msra.mxu0 0.0
    %1838 = vmatprep.subr.mxu0 0.0
    %1839 = vmatpush1.msra.mxu0 0.0
    %1840 = vmatprep.subr.mxu0 0.0
    %1841 = vmatpush1.msra.mxu0 0.0
    %1842 = vmatprep.subr.mxu0 0.0
    %1843 = vmatpush1.msra.mxu0 0.0
    %1844 = vmatprep.subr.mxu0 0.0
    %1845 = vmatpush1.msra.mxu0 0.0
    %1846 = vmatprep.subr.mxu0 0.0
    %1847 = vmatpush1.msra.mxu0 0.0
    %1848 = vmatprep.subr.mxu0 0.0
    %1849 = vmatpush1.msra.mxu0 0.0
    %1850 = vmatprep.subr.mxu0 0.0
    %1851 = vmatpush1.msra.mxu0 0.0
    %1852 = vmatprep.subr.mxu0 0.0
    %1853 = vmatpush1.msra.mxu0 0.0
    %1854 = vmatprep.subr.mxu0 0.0
    %1855 = vmatpush1.msra.mxu0 0.0
    %1856 = vmatprep.subr.mxu0 0.0
    %1857 = vmatpush1.msra.mxu0 0.0
    %1858 = vmatprep.subr.mxu0 0.0
    %1859 = vmatpush1.msra.mxu0 0.0
    %1860 = vmatprep.subr.mxu0 0.0
    %1861 = vmatpush1.msra.mxu0 0.0
    %1862 = vmatprep.subr.mxu0 0.0
    %1863 = vmatpush1.msra.mxu0 0.0
    %1864 = vmatprep.subr.mxu0 0.0
    %1865 = vmatpush1.msra.mxu0 0.0
    %1866 = vmatprep.subr.mxu0 0.0
    %1867 = vmatpush1.msra.mxu0 0.0
    %1868 = vmatprep.subr.mxu0 0.0
    %1869 = vmatpush1.msra.mxu0 0.0
    %1870 = vmatprep.subr.mxu0 0.0
    %1871 = vmatpush1.msra.mxu0 0.0
    %1872 = vmatprep.subr.mxu0 0.0
    %1873 = vmatpush1.msra.mxu0 0.0
    %1874 = vmatprep.subr.mxu0 0.0
    %1875 = vmatpush1.msra.mxu0 0.0
    %1876 = vmatprep.subr.mxu0 0.0
    %1877 = vmatpush1.msra.mxu0 0.0
    %1878 = vmatprep.mubr.f32.mxu0 0.0
    %1879 = vmatmul.mubr.f32.gmra.mrb[0].mxu0 %v1812
    %v1880 = vpop.f32.mrb[0].mxu0
    %v1881 = vadd.f32 %v184, %v1880
    %v1882 = vpop.f32.mrb[0].mxu0
    %1883 = vdwg.mxu0
    %v1884 = vxor.u32 %v1881, 2147483648
    %v1885 = vmul.f32 %v1884, 1.442695
    %v1886 = vpow.pop %v1885
    %v1887 = vadd.f32 %v1886, 1.0
    %v1888 = vrcp.pop %v1887
    %v1889 = vmul.f32 1.0, %v1888
    %v1890 = vtanh.pop %v1881
    %v1891 = vmul.f32 %v1889, %v1684
    %1893 = vrot.lane.b32.xlu0 %v1890, 64
    %v1894 = vpop.permute.xlu0 %1893
    %v1896 = vmul.f32 %v1889, %v1894
    %1898 = vrot.lane.b32.xlu0 %v1896, 32
    %v1899 = vpop.permute.xlu0 %1898
    %v1901 = vadd.f32 %v1891, %v1899
    %v1902 = vtanh.pop %v1901
    %1904 = vrot.lane.b32.xlu0 %v1902, 64
    %v1905 = vpop.permute.xlu0 %1904
    %v1907 = vmul.f32 %v1889, %v1905
    %v1908 = vtanh.pop %v1907
    %v1910 = vrot.slane %v612, 6
    %v1913 = vrot.slane %v829, 4
    %v1916 = vrot.slane %v1046, 2
    %v1919 = vrot.slane %v1474, 6
    %v1922 = vrot.slane %v1691, 4
    %v1925 = vrot.slane %v1908, 2
    %vm1927 = vcmask 1041408
    %v1928 = vsel %vm1927, %v396, %v1910
    %vm1929 = vcmask 1043456
    %v1930 = vsel %vm1929, %v1928, %v1913
    %vm1931 = vcmask 1045504
    %v1932 = vsel %vm1931, %v1930, %v1916
    %v1933 = vsel %vm1927, %v1258, %v1919
    %v1934 = vsel %vm1929, %v1933, %v1922
    %v1935 = vsel %vm1931, %v1934, %v1925
    %1938 = vrot.lane.b32.xlu0 %v1932, 32
    %v1939 = vpop.permute.xlu0 %1938
    %1940 = vrot.lane.b32.xlu0 %v1935, 32
    %v1941 = vpop.permute.xlu0 %1940
    %v1942 = vsel %vm193, %v1939, 0
    %v1944 = vsel %vm193, %v1941, 0
    %1946 = vmatprep.subr.mxu0 0.0
    %1947 = vmatpush1.msra.mxu0 %v82
    %1948 = vmatprep.subr.mxu0 0.0
    %1949 = vmatpush1.msra.mxu0 %v83
    %1950 = vmatprep.subr.mxu0 0.0
    %1951 = vmatpush1.msra.mxu0 %v84
    %1952 = vmatprep.subr.mxu0 0.0
    %1953 = vmatpush1.msra.mxu0 %v85
    %1954 = vmatprep.subr.mxu0 0.0
    %1955 = vmatpush1.msra.mxu0 0.0
    %1956 = vmatprep.subr.mxu0 0.0
    %1957 = vmatpush1.msra.mxu0 0.0
    %1958 = vmatprep.subr.mxu0 0.0
    %1959 = vmatpush1.msra.mxu0 0.0
    %1960 = vmatprep.subr.mxu0 0.0
    %1961 = vmatpush1.msra.mxu0 0.0
    %1962 = vmatprep.subr.mxu0 0.0
    %1963 = vmatpush1.msra.mxu0 0.0
    %1964 = vmatprep.subr.mxu0 0.0
    %1965 = vmatpush1.msra.mxu0 0.0
    %1966 = vmatprep.subr.mxu0 0.0
    %1967 = vmatpush1.msra.mxu0 0.0
    %1968 = vmatprep.subr.mxu0 0.0
    %1969 = vmatpush1.msra.mxu0 0.0
    %1970 = vmatprep.subr.mxu0 0.0
    %1971 = vmatpush1.msra.mxu0 0.0
    %1972 = vmatprep.subr.mxu0 0.0
    %1973 = vmatpush1.msra.mxu0 0.0
    %1974 = vmatprep.subr.mxu0 0.0
    %1975 = vmatpush1.msra.mxu0 0.0
    %1976 = vmatprep.subr.mxu0 0.0
    %1977 = vmatpush1.msra.mxu0 0.0
    %1978 = vmatprep.subr.mxu0 0.0
    %1979 = vmatpush1.msra.mxu0 0.0
    %1980 = vmatprep.subr.mxu0 0.0
    %1981 = vmatpush1.msra.mxu0 0.0
    %1982 = vmatprep.subr.mxu0 0.0
    %1983 = vmatpush1.msra.mxu0 0.0
    %1984 = vmatprep.subr.mxu0 0.0
    %1985 = vmatpush1.msra.mxu0 0.0
    %1986 = vmatprep.subr.mxu0 0.0
    %1987 = vmatpush1.msra.mxu0 0.0
    %1988 = vmatprep.subr.mxu0 0.0
    %1989 = vmatpush1.msra.mxu0 0.0
    %1990 = vmatprep.subr.mxu0 0.0
    %1991 = vmatpush1.msra.mxu0 0.0
    %1992 = vmatprep.subr.mxu0 0.0
    %1993 = vmatpush1.msra.mxu0 0.0
    %1994 = vmatprep.subr.mxu0 0.0
    %1995 = vmatpush1.msra.mxu0 0.0
    %1996 = vmatprep.subr.mxu0 0.0
    %1997 = vmatpush1.msra.mxu0 0.0
    %1998 = vmatprep.subr.mxu0 0.0
    %1999 = vmatpush1.msra.mxu0 0.0
    %2000 = vmatprep.subr.mxu0 0.0
    %2001 = vmatpush1.msra.mxu0 0.0
    %2002 = vmatprep.subr.mxu0 0.0
    %2003 = vmatpush1.msra.mxu0 0.0
    %2004 = vmatprep.subr.mxu0 0.0
    %2005 = vmatpush1.msra.mxu0 0.0
    %2006 = vmatprep.subr.mxu0 0.0
    %2007 = vmatpush1.msra.mxu0 0.0
    %2008 = vmatprep.subr.mxu0 0.0
    %2009 = vmatpush1.msra.mxu0 0.0
    %2010 = vmatprep.mubr.f32.mxu0 0.0
    %2011 = vmatmul.mubr.f32.gmra.mrb[0].mxu0 %v1942
    %v2012 = vpop.f32.mrb[0].mxu0
    %v2013 = vadd.f32 %v191, %v2012
    %v2014 = vpop.f32.mrb[0].mxu0
    %2015 = vmatprep.mubr.f32.mxu0 0.0
    %2016 = vmatmul.mubr.f32.gmra.mrb[0].mxu0 %v1944
    %v2017 = vpop.f32.mrb[0].mxu0
    %v2018 = vadd.f32 %v191, %v2017
    %v2019 = vpop.f32.mrb[0].mxu0
    %2020 = vdwg.mxu0
    %v2021 = vxor.u32 %v2013, 2147483648
    %v2022 = vxor.u32 %v2018, 2147483648
    %v2023 = vmul.f32 %v2021, 1.442695
    %v2024 = vpow.pop %v2023
    %v2025 = vmul.f32 %v2022, 1.442695
    %v2026 = vpow.pop %v2025
    %v2027 = vadd.f32 %v2024, 1.0
    %v2028 = vadd.f32 %v2026, 1.0
    %v2029 = vrcp.pop %v2027
    %v2030 = vmul.f32 1.0, %v2029
    %v2031 = vrcp.pop %v2028
    %v2032 = vmul.f32 1.0, %v2031
    %vm2033 = vcmask 31744
    %2034 = vst.msk [vmem:[%s8] sm:$0xff] %vm2033, %v2030
    %2035 = vst.msk [vmem:[%s8 + $0x8] sm:$0xff] %vm2033, %v2032
    // Predicated region
    $region46: #{tpu_custom_call.1} parent=1 // pred_check
      _
    $region47: #{tpu_custom_call.1} parent=1 // pred_check_branch
      %2037 = sbr.rel (0) target = $region49
    $region48: #{tpu_custom_call.1} parent=1 // pred_region
      _
    $region49: #{tpu_custom_call.1} parent=1 // pred_fallthru
      _
    // Predicated region
    $region50: #{tpu_custom_call.1} parent=1 // pred_check
      _
    $region51: #{tpu_custom_call.1} parent=1 // pred_check_branch
      %2039 = sbr.rel (0) target = $region53
    $region52: #{tpu_custom_call.1} parent=1 // pred_region
      _
    $region53: #{tpu_custom_call.1} parent=1 // pred_fallthru
      _
    %2040 = vsyncpa [#allocation3], 1
    %2041 = vsyncpa [#allocation5], 1

</llo_original>
